<compile_context>
chip_gen: v7x
topology: tpu7x:2x2x1
jax: 0.10.0
libtpu: 0.0.40
codegen_flags: <defaults>
</compile_context>

<pallas_src>
import functools

import jax
import jax.numpy as jnp
from jax.experimental import pallas as pl
from jax.experimental.pallas import tpu as pltpu


def _layernorm(x, gamma, beta, eps=1e-5):
    # x: (M, D) f32, gamma/beta: (1, D) f32
    mu = jnp.mean(x, axis=-1, keepdims=True)
    var = jnp.mean((x - mu) ** 2, axis=-1, keepdims=True)
    return (x - mu) * jax.lax.rsqrt(var + eps) * gamma + beta


def _erf(x):
    # Abramowitz & Stegun 7.1.26 (max abs err ~1.5e-7): matches torch's exact erf-GELU to f32
    # noise using only exp / mul / div (portable Mosaic lowering, exp goes to the EUP slot).
    p = jnp.float32(0.3275911)
    a1 = jnp.float32(0.254829592)
    a2 = jnp.float32(-0.284496736)
    a3 = jnp.float32(1.421413741)
    a4 = jnp.float32(-1.453152027)
    a5 = jnp.float32(1.061405429)
    ax = jnp.abs(x)
    t = 1.0 / (1.0 + p * ax)
    poly = ((((a5 * t + a4) * t + a3) * t + a2) * t + a1) * t
    y = 1.0 - poly * jnp.exp(-ax * ax)
    return jnp.where(x >= 0, y, -y)


def _gelu_exact(x):
    # torch.nn.GELU() (erf-based)
    return jnp.float32(0.5) * x * (1.0 + _erf(x * jnp.float32(0.7071067811865476)))


def transformer_layers_kernel(
    x_ref,            # (B_TILE, N, D)        f32  -- original input (read only at layer 0)
    g1_ref, b1_ref,   # (1, 1, D)             f32  -- LayerNorm before attention
    wqkv_ref,         # (1, D, 3*inner)       bf16 -- fused [Q|K|V], Q columns pre-scaled
    wout_ref,         # (1, heads, dh, D)     bf16 -- output projection, host-split per head
    bout_ref,         # (1, 1, D)             f32
    g2_ref, b2_ref,   # (1, 1, D)             f32  -- LayerNorm before FF
    w1_ref,           # (1, D, mlp)           bf16
    bb1_ref,          # (1, 1, mlp)           f32
    w2_ref,           # (1, mlp, D)           bf16
    bb2_ref,          # (1, 1, D)             f32
    o_ref,            # (B_TILE, N, D)        f32  -- residual stream, VMEM-resident across layers
    *,
    heads,
    dim_head,
):
    layer = pl.program_id(1)
    bt, N, D = o_ref.shape
    M = bt * N
    dh = dim_head
    inner = heads * dh

    # Residual stream lives in the output block (constant block index across the layer axis).
    @pl.when(layer == 0)
    def _():
        o_ref[...] = x_ref[...].astype(o_ref.dtype)

    x = o_ref[...].reshape(M, D).astype(jnp.float32)          # flatten tokens: (M, D)

    # ---------------- PreNorm + multi-head attention + residual ----------------
    xn = _layernorm(x, g1_ref[0], b1_ref[0]).astype(jnp.bfloat16)

    # Fused QKV projection: one big MXU matmul (attention scale already folded into Q columns).
    qkv = jnp.dot(xn, wqkv_ref[0], preferred_element_type=jnp.float32)   # (M, 3*inner) f32

    attn_out = jnp.zeros((M, D), jnp.float32)
    # Statically unrolled per-head loop: static lane slices + leading-dim reshapes only
    # (no transposes), batched over the B_TILE samples with leading-batch einsums.
    for h in range(heads):
        q = qkv[:, h * dh:(h + 1) * dh].reshape(bt, N, dh).astype(jnp.bfloat16)
        k = qkv[:, inner + h * dh:inner + (h + 1) * dh].reshape(bt, N, dh).astype(jnp.bfloat16)
        v = qkv[:, 2 * inner + h * dh:2 * inner + (h + 1) * dh].reshape(bt, N, dh).astype(jnp.bfloat16)

        s = jnp.einsum("bnd,bmd->bnm", q, k, preferred_element_type=jnp.float32)  # (bt, N, N)
        s = s - jnp.max(s, axis=-1, keepdims=True)
        p = jnp.exp(s)
        attn = p * pl.reciprocal(jnp.sum(p, axis=-1, keepdims=True), approx=True)

        ctx = jnp.einsum("bnm,bmd->bnd", attn.astype(jnp.bfloat16), v,
                         preferred_element_type=jnp.float32)                        # (bt, N, dh)
        # Contract this head's context directly against its (dh, D) slice of the output
        # projection (host-reshaped) and accumulate -> no head-concat, no transpose.
        attn_out = attn_out + jnp.dot(ctx.reshape(M, dh).astype(jnp.bfloat16),
                                      wout_ref[0, h], preferred_element_type=jnp.float32)

    x = x + attn_out + bout_ref[0]

    # ---------------- PreNorm + FeedForward (exact GELU) + residual ----------------
    xn2 = _layernorm(x, g2_ref[0], b2_ref[0]).astype(jnp.bfloat16)
    hid = jnp.dot(xn2, w1_ref[0], preferred_element_type=jnp.float32) + bb1_ref[0]
    hid = _gelu_exact(hid).astype(jnp.bfloat16)
    ff = jnp.dot(hid, w2_ref[0], preferred_element_type=jnp.float32) + bb2_ref[0]
    x = x + ff

    o_ref[...] = x.reshape(bt, N, D).astype(o_ref.dtype)


def _pick_batch_tile(B, N, max_rows=512):
    """Largest divisor of B with B_TILE*N <= max_rows (fills the MXU M-dim, bounds VMEM)."""
    best = 1
    for d in range(1, B + 1):
        if B % d == 0 and d * N <= max_rows:
            best = d
    return best


def _vmem_limit_bytes(b_tile, N, D, inner, mlp):
    """Derive a VMEM budget from the actual per-grid-step footprint, clamped to the chip."""
    M = b_tile * N
    w_bytes = 2 * (D * 3 * inner + inner * D + D * mlp + mlp * D)       # bf16 weights / layer
    v_bytes = 4 * (6 * D + mlp)                                         # f32 LN params + biases
    io_bytes = 4 * b_tile * N * D                                       # one residual block (f32)
    act_bytes = 4 * (M * 3 * inner + M * mlp + 2 * b_tile * N * N + 4 * M * D)
    est = 2 * (w_bytes + v_bytes) + 4 * io_bytes + act_bytes            # 2x weight double-buffer
    try:
        phys = pltpu.get_tpu_info().vmem_capacity_bytes                 # 64 MiB on v7x, 128 MiB v5e/v6e
    except Exception:
        phys = 64 * 1024 * 1024
    return int(min(max(2 * est, 8 * 1024 * 1024), int(0.75 * phys)))


def transformer_blocks_pallas(x, params, *, heads, dim_head, batch_tile=None):
    """x: (B, N, D). params: list (per layer) of tuples from init_params()."""
    B, N, D = x.shape
    L = len(params)
    inner = heads * dim_head
    mlp = params[0][7].shape[1]
    scale = jnp.float32(dim_head ** -0.5)

    if N % 8 != 0:
        # TODO(synk): pad the token axis to a multiple of the sublane tile instead of raising.
        raise ValueError("token count N must be a multiple of 8 (sublane tile)")

    b_tile = batch_tile if batch_tile is not None else _pick_batch_tile(B, N)
    assert B % b_tile == 0

    # ---- host-side weight prep: stack per-layer, bf16 matmul weights, fold scale into Q ----
    def prep_qkv(w):                                   # (D, 3*inner), columns [Q|K|V]
        return w.astype(jnp.float32).at[:, :inner].multiply(scale)

    g1 = jnp.stack([p[0] for p in params])                                      # (L, 1, D)
    b1 = jnp.stack([p[1] for p in params])                                      # (L, 1, D)
    wqkv = jnp.stack([prep_qkv(p[2]) for p in params]).astype(jnp.bfloat16)     # (L, D, 3*inner)
    wout = jnp.stack([p[3].reshape(heads, dim_head, D)
                      for p in params]).astype(jnp.bfloat16)                    # (L, heads, dh, D)
    bout = jnp.stack([p[4] for p in params])                                    # (L, 1, D)
    g2 = jnp.stack([p[5] for p in params])                                      # (L, 1, D)
    b2 = jnp.stack([p[6] for p in params])                                      # (L, 1, D)
    w1 = jnp.stack([p[7] for p in params]).astype(jnp.bfloat16)                 # (L, D, mlp)
    bb1 = jnp.stack([p[8] for p in params])                                     # (L, 1, mlp)
    w2 = jnp.stack([p[9] for p in params]).astype(jnp.bfloat16)                 # (L, mlp, D)
    bb2 = jnp.stack([p[10] for p in params])                                    # (L, 1, D)

    kernel = functools.partial(transformer_layers_kernel, heads=heads, dim_head=dim_head)

    def layer_spec(shape):
        ndim = len(shape)
        return pl.BlockSpec((1,) + tuple(shape[1:]),
                            lambda b, l, _nd=ndim: (l,) + (0,) * (_nd - 1))

    in_specs = [
        pl.BlockSpec((b_tile, N, D), lambda b, l: (b, 0, 0)),   # x: same block across layer axis
        layer_spec(g1.shape), layer_spec(b1.shape),
        layer_spec(wqkv.shape),
        layer_spec(wout.shape), layer_spec(bout.shape),
        layer_spec(g2.shape), layer_spec(b2.shape),
        layer_spec(w1.shape), layer_spec(bb1.shape),
        layer_spec(w2.shape), layer_spec(bb2.shape),
    ]

    return pl.pallas_call(
        kernel,
        out_shape=jax.ShapeDtypeStruct((B, N, D), x.dtype),
        grid=(B // b_tile, L),
        in_specs=in_specs,
        out_specs=pl.BlockSpec((b_tile, N, D), lambda b, l: (b, 0, 0)),
        compiler_params=pltpu.CompilerParams(
            dimension_semantics=("parallel", "arbitrary"),
            vmem_limit_bytes=_vmem_limit_bytes(b_tile, N, D, inner, mlp),
        ),
    )(x, g1, b1, wqkv, wout, bout, g2, b2, w1, bb1, w2, bb2)


# ---------------- pure-JAX reference (mirrors the PyTorch forward, f32) ----------------
def _layernorm_ref(x, gamma, beta, eps=1e-5):
    mu = jnp.mean(x, axis=-1, keepdims=True)
    var = jnp.mean((x - mu) ** 2, axis=-1, keepdims=True)
    return (x - mu) / jnp.sqrt(var + eps) * gamma + beta


def transformer_blocks_ref(x, params, *, heads, dim_head):
    B, N, D = x.shape
    inner = heads * dim_head
    for (g1, b1, wqkv, wout, bout, g2, b2, w1, bb1, w2, bb2) in params:
        h = _layernorm_ref(x, g1, b1)
        qkv = h @ wqkv
        q, k, v = jnp.split(qkv, 3, axis=-1)
        split = lambda t: t.reshape(B, N, heads, dim_head).transpose(0, 2, 1, 3)
        q, k, v = split(q), split(k), split(v)
        dots = jnp.einsum("bhnd,bhmd->bhnm", q, k) * (dim_head ** -0.5)
        attn = jax.nn.softmax(dots, axis=-1)
        out = jnp.einsum("bhnm,bhmd->bhnd", attn, v)
        out = out.transpose(0, 2, 1, 3).reshape(B, N, inner)
        x = x + out @ wout + bout
        h2 = _layernorm_ref(x, g2, b2)
        ff = jax.nn.gelu(h2 @ w1 + bb1, approximate=False) @ w2 + bb2
        x = x + ff
    return x


def init_params(key, depth, dim, heads, dim_head, mlp_dim):
    inner = heads * dim_head
    params = []
    for _ in range(depth):
        keys = jax.random.split(key, 8)
        key = keys[0]
        g1 = 1.0 + 0.1 * jax.random.normal(keys[1], (1, dim), jnp.float32)
        b1 = 0.1 * jax.random.normal(keys[2], (1, dim), jnp.float32)
        wqkv = 0.05 * jax.random.normal(keys[3], (dim, 3 * inner), jnp.float32)
        wout = 0.05 * jax.random.normal(keys[4], (inner, dim), jnp.float32)
        bout = jnp.zeros((1, dim), jnp.float32)
        g2 = 1.0 + 0.1 * jax.random.normal(keys[5], (1, dim), jnp.float32)
        b2 = 0.1 * jax.random.normal(keys[6], (1, dim), jnp.float32)
        k7 = jax.random.split(keys[7], 4)
        w1 = 0.05 * jax.random.normal(k7[0], (dim, mlp_dim), jnp.float32)
        bb1 = 0.05 * jax.random.normal(k7[1], (1, mlp_dim), jnp.float32)
        w2 = 0.05 * jax.random.normal(k7[2], (mlp_dim, dim), jnp.float32)
        bb2 = 0.05 * jax.random.normal(k7[3], (1, dim), jnp.float32)
        params.append((g1, b1, wqkv, wout, bout, g2, b2, w1, bb1, w2, bb2))
    return params


if __name__ == "__main__":
    # Small shapes consistent with the module: batch=2, seq=8, dim=32, heads=4, dim_head=8,
    # mlp=64, depth=2.  dropout=0.0 -> no-op; register_hook only records attention maps and has
    # no effect on the forward output.
    B, N, D = 2, 8, 32
    HEADS, DIM_HEAD, MLP, DEPTH = 4, 8, 64, 2

    key = jax.random.PRNGKey(0)
    kx, kp = jax.random.split(key)
    x = jax.random.normal(kx, (B, N, D), jnp.float32)
    params = init_params(kp, DEPTH, D, HEADS, DIM_HEAD, MLP)

    ref = transformer_blocks_ref(x, params, heads=HEADS, dim_head=DIM_HEAD)

    out = transformer_blocks_pallas(x, params, heads=HEADS, dim_head=DIM_HEAD)
    out = jax.block_until_ready(out)

    assert out.shape == (B, N, D)
    # bf16 MXU operands + approx-reciprocal softmax -> loosened tolerance vs the f32 reference.
    err = jnp.max(jnp.abs(out - ref))
    assert jnp.allclose(out, ref, rtol=3e-2, atol=3e-2), f"max abs err = {err}"

    print("KERNEL_OK")
</pallas_src>

<mosaic_0001>
module attributes {stable_mosaic.version = 11 : i64} {
  func.func @transformer_layers_kernel(%arg0: i32, %arg1: i32, %arg2: memref<2x8x32xf32, #tpu.memory_space<vmem>>, %arg3: memref<1x1x32xf32, #tpu.memory_space<vmem>>, %arg4: memref<1x1x32xf32, #tpu.memory_space<vmem>>, %arg5: memref<1x32x96xbf16, #tpu.memory_space<vmem>>, %arg6: memref<1x4x8x32xbf16, #tpu.memory_space<vmem>>, %arg7: memref<1x1x32xf32, #tpu.memory_space<vmem>>, %arg8: memref<1x1x32xf32, #tpu.memory_space<vmem>>, %arg9: memref<1x1x32xf32, #tpu.memory_space<vmem>>, %arg10: memref<1x32x64xbf16, #tpu.memory_space<vmem>>, %arg11: memref<1x1x64xf32, #tpu.memory_space<vmem>>, %arg12: memref<1x64x32xbf16, #tpu.memory_space<vmem>>, %arg13: memref<1x1x32xf32, #tpu.memory_space<vmem>>, %arg14: memref<2x8x32xf32, #tpu.memory_space<vmem>>) attributes {dimension_semantics = [#tpu.dimension_semantics<parallel>, #tpu.dimension_semantics<arbitrary>], iteration_bounds = array<i64: 1, 2>, scalar_prefetch = 0 : i64, scratch_operands = 0 : i64, tpu.core_type = #tpu.core_type<tc>, window_params = [{transform_indices = @transform_0, window_bounds = array<i64: 2, 8, 32>}, {transform_indices = @transform_1, window_bounds = array<i64: 1, 1, 32>}, {transform_indices = @transform_2, window_bounds = array<i64: 1, 1, 32>}, {transform_indices = @transform_3, window_bounds = array<i64: 1, 32, 96>}, {transform_indices = @transform_4, window_bounds = array<i64: 1, 4, 8, 32>}, {transform_indices = @transform_5, window_bounds = array<i64: 1, 1, 32>}, {transform_indices = @transform_6, window_bounds = array<i64: 1, 1, 32>}, {transform_indices = @transform_7, window_bounds = array<i64: 1, 1, 32>}, {transform_indices = @transform_8, window_bounds = array<i64: 1, 32, 64>}, {transform_indices = @transform_9, window_bounds = array<i64: 1, 1, 64>}, {transform_indices = @transform_10, window_bounds = array<i64: 1, 64, 32>}, {transform_indices = @transform_11, window_bounds = array<i64: 1, 1, 32>}, {transform_indices = @transform_12, window_bounds = array<i64: 2, 8, 32>}]} {
    %c0_i32 = arith.constant 0 : i32
    %0 = arith.cmpi eq, %arg1, %c0_i32 : i32
    %1 = arith.extui %0 : i1 to i32
    %c0_i32_0 = arith.constant 0 : i32
    %2 = arith.cmpi ne, %1, %c0_i32_0 : i32
    scf.if %2 {
      %c0_97 = arith.constant 0 : index
      %c0_98 = arith.constant 0 : index
      %c0_99 = arith.constant 0 : index
      %238 = vector.load %arg2[%c0_97, %c0_98, %c0_99] : memref<2x8x32xf32, #tpu.memory_space<vmem>>, vector<2x8x32xf32>
      %c0_100 = arith.constant 0 : index
      %c0_101 = arith.constant 0 : index
      %c0_102 = arith.constant 0 : index
      %239 = vector.load %arg14[%c0_100, %c0_101, %c0_102] : memref<2x8x32xf32, #tpu.memory_space<vmem>>, vector<2x8x32xf32>
      tpu.vector_store %arg14[%c0_100, %c0_101, %c0_102], %238 {strides = array<i32>} : memref<2x8x32xf32, #tpu.memory_space<vmem>>, vector<2x8x32xf32>,
    } else {
    }
    %c0 = arith.constant 0 : index
    %c0_1 = arith.constant 0 : index
    %c0_2 = arith.constant 0 : index
    %3 = vector.load %arg14[%c0, %c0_1, %c0_2] : memref<2x8x32xf32, #tpu.memory_space<vmem>>, vector<2x8x32xf32>
    %4 = vector.shape_cast %3 : vector<2x8x32xf32> to vector<16x32xf32>
    %c0_3 = arith.constant 0 : index
    %c0_4 = arith.constant 0 : index
    %c0_5 = arith.constant 0 : index
    %5 = vector.load %arg3[%c0_3, %c0_4, %c0_5] : memref<1x1x32xf32, #tpu.memory_space<vmem>>, vector<1x1x32xf32>
    %6 = vector.shape_cast %5 : vector<1x1x32xf32> to vector<1x32xf32>
    %c0_6 = arith.constant 0 : index
    %c0_7 = arith.constant 0 : index
    %c0_8 = arith.constant 0 : index
    %7 = vector.load %arg4[%c0_6, %c0_7, %c0_8] : memref<1x1x32xf32, #tpu.memory_space<vmem>>, vector<1x1x32xf32>
    %8 = vector.shape_cast %7 : vector<1x1x32xf32> to vector<1x32xf32>
    %cst = arith.constant dense<0.000000e+00> : vector<16xf32>
    %9 = vector.multi_reduction <add>, %4, %cst [1] : vector<16x32xf32> to vector<16xf32>
    %10 = vector.shape_cast %9 : vector<16xf32> to vector<16x1xf32>
    %cst_9 = arith.constant 3.200000e+01 : f32
    %11 = vector.broadcast %cst_9 : f32 to vector<16x1xf32>
    %12 = arith.divf %10, %11 : vector<16x1xf32>
    %13 = vector.broadcast %12 : vector<16x1xf32> to vector<16x32xf32>
    %14 = arith.subf %4, %13 : vector<16x32xf32>
    %15 = arith.mulf %14, %14 : vector<16x32xf32>
    %cst_10 = arith.constant dense<0.000000e+00> : vector<16xf32>
    %16 = vector.multi_reduction <add>, %15, %cst_10 [1] : vector<16x32xf32> to vector<16xf32>
    %17 = vector.shape_cast %16 : vector<16xf32> to vector<16x1xf32>
    %cst_11 = arith.constant 3.200000e+01 : f32
    %18 = vector.broadcast %cst_11 : f32 to vector<16x1xf32>
    %19 = arith.divf %17, %18 : vector<16x1xf32>
    %20 = vector.broadcast %12 : vector<16x1xf32> to vector<16x32xf32>
    %21 = arith.subf %4, %20 : vector<16x32xf32>
    %cst_12 = arith.constant 9.99999974E-6 : f32
    %22 = vector.broadcast %cst_12 : f32 to vector<16x1xf32>
    %23 = arith.addf %19, %22 : vector<16x1xf32>
    %24 = math.rsqrt %23 : vector<16x1xf32>
    %25 = vector.broadcast %24 : vector<16x1xf32> to vector<16x32xf32>
    %26 = arith.mulf %21, %25 : vector<16x32xf32>
    %27 = vector.broadcast %6 : vector<1x32xf32> to vector<16x32xf32>
    %28 = arith.mulf %26, %27 : vector<16x32xf32>
    %29 = vector.broadcast %8 : vector<1x32xf32> to vector<16x32xf32>
    %30 = arith.addf %28, %29 : vector<16x32xf32>
    %31 = arith.truncf %30 : vector<16x32xf32> to vector<16x32xbf16>
    %c0_13 = arith.constant 0 : index
    %c0_14 = arith.constant 0 : index
    %c0_15 = arith.constant 0 : index
    %32 = vector.load %arg5[%c0_13, %c0_14, %c0_15] : memref<1x32x96xbf16, #tpu.memory_space<vmem>>, vector<1x32x96xbf16>
    %33 = vector.shape_cast %32 : vector<1x32x96xbf16> to vector<32x96xbf16>
    %cst_16 = arith.constant dense<0.000000e+00> : vector<16x96xf32>
    %34 = tpu.matmul %31, %33, %cst_16 {dimension_numbers = #tpu.dot_dimension_numbers<[1], [0], [0], [1], [0, 0, 1, 1], [], []>} : vector<16x32xbf16>, vector<32x96xbf16>, vector<16x96xf32> -> vector<16x96xf32>
    %cst_17 = arith.constant 0.000000e+00 : f32
    %35 = vector.broadcast %cst_17 : f32 to vector<16x32xf32>
    %36 = vector.extract_strided_slice %34 {offsets = [0, 0], sizes = [16, 8], strides = [1, 1]} : vector<16x96xf32> to vector<16x8xf32>
    %37 = vector.shape_cast %36 : vector<16x8xf32> to vector<2x8x8xf32>
    %38 = arith.truncf %37 : vector<2x8x8xf32> to vector<2x8x8xbf16>
    %39 = vector.extract_strided_slice %34 {offsets = [0, 32], sizes = [16, 8], strides = [1, 1]} : vector<16x96xf32> to vector<16x8xf32>
    %40 = vector.shape_cast %39 : vector<16x8xf32> to vector<2x8x8xf32>
    %41 = arith.truncf %40 : vector<2x8x8xf32> to vector<2x8x8xbf16>
    %42 = vector.extract_strided_slice %34 {offsets = [0, 64], sizes = [16, 8], strides = [1, 1]} : vector<16x96xf32> to vector<16x8xf32>
    %43 = vector.shape_cast %42 : vector<16x8xf32> to vector<2x8x8xf32>
    %44 = arith.truncf %43 : vector<2x8x8xf32> to vector<2x8x8xbf16>
    "tpu.trace_start"() <{level = 10 : i32, message = "bnd,bmd->bnm"}> : () -> ()
    %cst_18 = arith.constant dense<0.000000e+00> : vector<2x8x8xf32>
    %45 = tpu.matmul %38, %41, %cst_18 {dimension_numbers = #tpu.dot_dimension_numbers<[2], [2], [1], [1], [0, 0, 0, 1, 1, 1], [0], [0]>} : vector<2x8x8xbf16>, vector<2x8x8xbf16>, vector<2x8x8xf32> -> vector<2x8x8xf32>
    "tpu.trace_stop"() : () -> ()
    %cst_19 = arith.constant dense<0xFF800000> : vector<2x8xf32>
    %46 = vector.multi_reduction <maximumf>, %45, %cst_19 [2] : vector<2x8x8xf32> to vector<2x8xf32>
    %47 = vector.shape_cast %46 : vector<2x8xf32> to vector<2x8x1xf32>
    %48 = vector.broadcast %47 : vector<2x8x1xf32> to vector<2x8x8xf32>
    %49 = arith.subf %45, %48 : vector<2x8x8xf32>
    %50 = math.exp %49 : vector<2x8x8xf32>
    %cst_20 = arith.constant dense<0.000000e+00> : vector<2x8xf32>
    %51 = vector.multi_reduction <add>, %50, %cst_20 [2] : vector<2x8x8xf32> to vector<2x8xf32>
    %52 = vector.shape_cast %51 : vector<2x8xf32> to vector<2x8x1xf32>
    %53 = tpu.reciprocal %52 {approx = true} : vector<2x8x1xf32> -> vector<2x8x1xf32>
    %54 = vector.broadcast %53 : vector<2x8x1xf32> to vector<2x8x8xf32>
    %55 = arith.mulf %50, %54 : vector<2x8x8xf32>
    %56 = arith.truncf %55 : vector<2x8x8xf32> to vector<2x8x8xbf16>
    "tpu.trace_start"() <{level = 10 : i32, message = "bnm,bmd->bnd"}> : () -> ()
    %cst_21 = arith.constant dense<0.000000e+00> : vector<2x8x8xf32>
    %57 = tpu.matmul %56, %44, %cst_21 {dimension_numbers = #tpu.dot_dimension_numbers<[2], [1], [1], [2], [0, 0, 0, 1, 1, 2], [0], [0]>} : vector<2x8x8xbf16>, vector<2x8x8xbf16>, vector<2x8x8xf32> -> vector<2x8x8xf32>
    "tpu.trace_stop"() : () -> ()
    %58 = vector.shape_cast %57 : vector<2x8x8xf32> to vector<16x8xf32>
    %59 = arith.truncf %58 : vector<16x8xf32> to vector<16x8xbf16>
    %c0_22 = arith.constant 0 : index
    %c0_23 = arith.constant 0 : index
    %c0_24 = arith.constant 0 : index
    %c0_25 = arith.constant 0 : index
    %60 = vector.load %arg6[%c0_22, %c0_23, %c0_24, %c0_25] : memref<1x4x8x32xbf16, #tpu.memory_space<vmem>>, vector<1x1x8x32xbf16>
    %61 = vector.shape_cast %60 : vector<1x1x8x32xbf16> to vector<8x32xbf16>
    %cst_26 = arith.constant dense<0.000000e+00> : vector<16x32xf32>
    %62 = tpu.matmul %59, %61, %cst_26 {dimension_numbers = #tpu.dot_dimension_numbers<[1], [0], [0], [1], [0, 0, 1, 1], [], []>} : vector<16x8xbf16>, vector<8x32xbf16>, vector<16x32xf32> -> vector<16x32xf32>
    %63 = arith.addf %35, %62 : vector<16x32xf32>
    %64 = vector.extract_strided_slice %34 {offsets = [0, 8], sizes = [16, 8], strides = [1, 1]} : vector<16x96xf32> to vector<16x8xf32>
    %65 = vector.shape_cast %64 : vector<16x8xf32> to vector<2x8x8xf32>
    %66 = arith.truncf %65 : vector<2x8x8xf32> to vector<2x8x8xbf16>
    %67 = vector.extract_strided_slice %34 {offsets = [0, 40], sizes = [16, 8], strides = [1, 1]} : vector<16x96xf32> to vector<16x8xf32>
    %68 = vector.shape_cast %67 : vector<16x8xf32> to vector<2x8x8xf32>
    %69 = arith.truncf %68 : vector<2x8x8xf32> to vector<2x8x8xbf16>
    %70 = vector.extract_strided_slice %34 {offsets = [0, 72], sizes = [16, 8], strides = [1, 1]} : vector<16x96xf32> to vector<16x8xf32>
    %71 = vector.shape_cast %70 : vector<16x8xf32> to vector<2x8x8xf32>
    %72 = arith.truncf %71 : vector<2x8x8xf32> to vector<2x8x8xbf16>
    "tpu.trace_start"() <{level = 10 : i32, message = "bnd,bmd->bnm"}> : () -> ()
    %cst_27 = arith.constant dense<0.000000e+00> : vector<2x8x8xf32>
    %73 = tpu.matmul %66, %69, %cst_27 {dimension_numbers = #tpu.dot_dimension_numbers<[2], [2], [1], [1], [0, 0, 0, 1, 1, 1], [0], [0]>} : vector<2x8x8xbf16>, vector<2x8x8xbf16>, vector<2x8x8xf32> -> vector<2x8x8xf32>
    "tpu.trace_stop"() : () -> ()
    %cst_28 = arith.constant dense<0xFF800000> : vector<2x8xf32>
    %74 = vector.multi_reduction <maximumf>, %73, %cst_28 [2] : vector<2x8x8xf32> to vector<2x8xf32>
    %75 = vector.shape_cast %74 : vector<2x8xf32> to vector<2x8x1xf32>
    %76 = vector.broadcast %75 : vector<2x8x1xf32> to vector<2x8x8xf32>
    %77 = arith.subf %73, %76 : vector<2x8x8xf32>
    %78 = math.exp %77 : vector<2x8x8xf32>
    %cst_29 = arith.constant dense<0.000000e+00> : vector<2x8xf32>
    %79 = vector.multi_reduction <add>, %78, %cst_29 [2] : vector<2x8x8xf32> to vector<2x8xf32>
    %80 = vector.shape_cast %79 : vector<2x8xf32> to vector<2x8x1xf32>
    %81 = tpu.reciprocal %80 {approx = true} : vector<2x8x1xf32> -> vector<2x8x1xf32>
    %82 = vector.broadcast %81 : vector<2x8x1xf32> to vector<2x8x8xf32>
    %83 = arith.mulf %78, %82 : vector<2x8x8xf32>
    %84 = arith.truncf %83 : vector<2x8x8xf32> to vector<2x8x8xbf16>
    "tpu.trace_start"() <{level = 10 : i32, message = "bnm,bmd->bnd"}> : () -> ()
    %cst_30 = arith.constant dense<0.000000e+00> : vector<2x8x8xf32>
    %85 = tpu.matmul %84, %72, %cst_30 {dimension_numbers = #tpu.dot_dimension_numbers<[2], [1], [1], [2], [0, 0, 0, 1, 1, 2], [0], [0]>} : vector<2x8x8xbf16>, vector<2x8x8xbf16>, vector<2x8x8xf32> -> vector<2x8x8xf32>
    "tpu.trace_stop"() : () -> ()
    %86 = vector.shape_cast %85 : vector<2x8x8xf32> to vector<16x8xf32>
    %87 = arith.truncf %86 : vector<16x8xf32> to vector<16x8xbf16>
    %c0_31 = arith.constant 0 : index
    %c1 = arith.constant 1 : index
    %c0_32 = arith.constant 0 : index
    %c0_33 = arith.constant 0 : index
    %88 = vector.load %arg6[%c0_31, %c1, %c0_32, %c0_33] : memref<1x4x8x32xbf16, #tpu.memory_space<vmem>>, vector<1x1x8x32xbf16>
    %89 = vector.shape_cast %88 : vector<1x1x8x32xbf16> to vector<8x32xbf16>
    %cst_34 = arith.constant dense<0.000000e+00> : vector<16x32xf32>
    %90 = tpu.matmul %87, %89, %cst_34 {dimension_numbers = #tpu.dot_dimension_numbers<[1], [0], [0], [1], [0, 0, 1, 1], [], []>} : vector<16x8xbf16>, vector<8x32xbf16>, vector<16x32xf32> -> vector<16x32xf32>
    %91 = arith.addf %63, %90 : vector<16x32xf32>
    %92 = vector.extract_strided_slice %34 {offsets = [0, 16], sizes = [16, 8], strides = [1, 1]} : vector<16x96xf32> to vector<16x8xf32>
    %93 = vector.shape_cast %92 : vector<16x8xf32> to vector<2x8x8xf32>
    %94 = arith.truncf %93 : vector<2x8x8xf32> to vector<2x8x8xbf16>
    %95 = vector.extract_strided_slice %34 {offsets = [0, 48], sizes = [16, 8], strides = [1, 1]} : vector<16x96xf32> to vector<16x8xf32>
    %96 = vector.shape_cast %95 : vector<16x8xf32> to vector<2x8x8xf32>
    %97 = arith.truncf %96 : vector<2x8x8xf32> to vector<2x8x8xbf16>
    %98 = vector.extract_strided_slice %34 {offsets = [0, 80], sizes = [16, 8], strides = [1, 1]} : vector<16x96xf32> to vector<16x8xf32>
    %99 = vector.shape_cast %98 : vector<16x8xf32> to vector<2x8x8xf32>
    %100 = arith.truncf %99 : vector<2x8x8xf32> to vector<2x8x8xbf16>
    "tpu.trace_start"() <{level = 10 : i32, message = "bnd,bmd->bnm"}> : () -> ()
    %cst_35 = arith.constant dense<0.000000e+00> : vector<2x8x8xf32>
    %101 = tpu.matmul %94, %97, %cst_35 {dimension_numbers = #tpu.dot_dimension_numbers<[2], [2], [1], [1], [0, 0, 0, 1, 1, 1], [0], [0]>} : vector<2x8x8xbf16>, vector<2x8x8xbf16>, vector<2x8x8xf32> -> vector<2x8x8xf32>
    "tpu.trace_stop"() : () -> ()
    %cst_36 = arith.constant dense<0xFF800000> : vector<2x8xf32>
    %102 = vector.multi_reduction <maximumf>, %101, %cst_36 [2] : vector<2x8x8xf32> to vector<2x8xf32>
    %103 = vector.shape_cast %102 : vector<2x8xf32> to vector<2x8x1xf32>
    %104 = vector.broadcast %103 : vector<2x8x1xf32> to vector<2x8x8xf32>
    %105 = arith.subf %101, %104 : vector<2x8x8xf32>
    %106 = math.exp %105 : vector<2x8x8xf32>
    %cst_37 = arith.constant dense<0.000000e+00> : vector<2x8xf32>
    %107 = vector.multi_reduction <add>, %106, %cst_37 [2] : vector<2x8x8xf32> to vector<2x8xf32>
    %108 = vector.shape_cast %107 : vector<2x8xf32> to vector<2x8x1xf32>
    %109 = tpu.reciprocal %108 {approx = true} : vector<2x8x1xf32> -> vector<2x8x1xf32>
    %110 = vector.broadcast %109 : vector<2x8x1xf32> to vector<2x8x8xf32>
    %111 = arith.mulf %106, %110 : vector<2x8x8xf32>
    %112 = arith.truncf %111 : vector<2x8x8xf32> to vector<2x8x8xbf16>
    "tpu.trace_start"() <{level = 10 : i32, message = "bnm,bmd->bnd"}> : () -> ()
    %cst_38 = arith.constant dense<0.000000e+00> : vector<2x8x8xf32>
    %113 = tpu.matmul %112, %100, %cst_38 {dimension_numbers = #tpu.dot_dimension_numbers<[2], [1], [1], [2], [0, 0, 0, 1, 1, 2], [0], [0]>} : vector<2x8x8xbf16>, vector<2x8x8xbf16>, vector<2x8x8xf32> -> vector<2x8x8xf32>
    "tpu.trace_stop"() : () -> ()
    %114 = vector.shape_cast %113 : vector<2x8x8xf32> to vector<16x8xf32>
    %115 = arith.truncf %114 : vector<16x8xf32> to vector<16x8xbf16>
    %c0_39 = arith.constant 0 : index
    %c2 = arith.constant 2 : index
    %c0_40 = arith.constant 0 : index
    %c0_41 = arith.constant 0 : index
    %116 = vector.load %arg6[%c0_39, %c2, %c0_40, %c0_41] : memref<1x4x8x32xbf16, #tpu.memory_space<vmem>>, vector<1x1x8x32xbf16>
    %117 = vector.shape_cast %116 : vector<1x1x8x32xbf16> to vector<8x32xbf16>
    %cst_42 = arith.constant dense<0.000000e+00> : vector<16x32xf32>
    %118 = tpu.matmul %115, %117, %cst_42 {dimension_numbers = #tpu.dot_dimension_numbers<[1], [0], [0], [1], [0, 0, 1, 1], [], []>} : vector<16x8xbf16>, vector<8x32xbf16>, vector<16x32xf32> -> vector<16x32xf32>
    %119 = arith.addf %91, %118 : vector<16x32xf32>
    %120 = vector.extract_strided_slice %34 {offsets = [0, 24], sizes = [16, 8], strides = [1, 1]} : vector<16x96xf32> to vector<16x8xf32>
    %121 = vector.shape_cast %120 : vector<16x8xf32> to vector<2x8x8xf32>
    %122 = arith.truncf %121 : vector<2x8x8xf32> to vector<2x8x8xbf16>
    %123 = vector.extract_strided_slice %34 {offsets = [0, 56], sizes = [16, 8], strides = [1, 1]} : vector<16x96xf32> to vector<16x8xf32>
    %124 = vector.shape_cast %123 : vector<16x8xf32> to vector<2x8x8xf32>
    %125 = arith.truncf %124 : vector<2x8x8xf32> to vector<2x8x8xbf16>
    %126 = vector.extract_strided_slice %34 {offsets = [0, 88], sizes = [16, 8], strides = [1, 1]} : vector<16x96xf32> to vector<16x8xf32>
    %127 = vector.shape_cast %126 : vector<16x8xf32> to vector<2x8x8xf32>
    %128 = arith.truncf %127 : vector<2x8x8xf32> to vector<2x8x8xbf16>
    "tpu.trace_start"() <{level = 10 : i32, message = "bnd,bmd->bnm"}> : () -> ()
    %cst_43 = arith.constant dense<0.000000e+00> : vector<2x8x8xf32>
    %129 = tpu.matmul %122, %125, %cst_43 {dimension_numbers = #tpu.dot_dimension_numbers<[2], [2], [1], [1], [0, 0, 0, 1, 1, 1], [0], [0]>} : vector<2x8x8xbf16>, vector<2x8x8xbf16>, vector<2x8x8xf32> -> vector<2x8x8xf32>
    "tpu.trace_stop"() : () -> ()
    %cst_44 = arith.constant dense<0xFF800000> : vector<2x8xf32>
    %130 = vector.multi_reduction <maximumf>, %129, %cst_44 [2] : vector<2x8x8xf32> to vector<2x8xf32>
    %131 = vector.shape_cast %130 : vector<2x8xf32> to vector<2x8x1xf32>
    %132 = vector.broadcast %131 : vector<2x8x1xf32> to vector<2x8x8xf32>
    %133 = arith.subf %129, %132 : vector<2x8x8xf32>
    %134 = math.exp %133 : vector<2x8x8xf32>
    %cst_45 = arith.constant dense<0.000000e+00> : vector<2x8xf32>
    %135 = vector.multi_reduction <add>, %134, %cst_45 [2] : vector<2x8x8xf32> to vector<2x8xf32>
    %136 = vector.shape_cast %135 : vector<2x8xf32> to vector<2x8x1xf32>
    %137 = tpu.reciprocal %136 {approx = true} : vector<2x8x1xf32> -> vector<2x8x1xf32>
    %138 = vector.broadcast %137 : vector<2x8x1xf32> to vector<2x8x8xf32>
    %139 = arith.mulf %134, %138 : vector<2x8x8xf32>
    %140 = arith.truncf %139 : vector<2x8x8xf32> to vector<2x8x8xbf16>
    "tpu.trace_start"() <{level = 10 : i32, message = "bnm,bmd->bnd"}> : () -> ()
    %cst_46 = arith.constant dense<0.000000e+00> : vector<2x8x8xf32>
    %141 = tpu.matmul %140, %128, %cst_46 {dimension_numbers = #tpu.dot_dimension_numbers<[2], [1], [1], [2], [0, 0, 0, 1, 1, 2], [0], [0]>} : vector<2x8x8xbf16>, vector<2x8x8xbf16>, vector<2x8x8xf32> -> vector<2x8x8xf32>
    "tpu.trace_stop"() : () -> ()
    %142 = vector.shape_cast %141 : vector<2x8x8xf32> to vector<16x8xf32>
    %143 = arith.truncf %142 : vector<16x8xf32> to vector<16x8xbf16>
    %c0_47 = arith.constant 0 : index
    %c3 = arith.constant 3 : index
    %c0_48 = arith.constant 0 : index
    %c0_49 = arith.constant 0 : index
    %144 = vector.load %arg6[%c0_47, %c3, %c0_48, %c0_49] : memref<1x4x8x32xbf16, #tpu.memory_space<vmem>>, vector<1x1x8x32xbf16>
    %145 = vector.shape_cast %144 : vector<1x1x8x32xbf16> to vector<8x32xbf16>
    %cst_50 = arith.constant dense<0.000000e+00> : vector<16x32xf32>
    %146 = tpu.matmul %143, %145, %cst_50 {dimension_numbers = #tpu.dot_dimension_numbers<[1], [0], [0], [1], [0, 0, 1, 1], [], []>} : vector<16x8xbf16>, vector<8x32xbf16>, vector<16x32xf32> -> vector<16x32xf32>
    %147 = arith.addf %119, %146 : vector<16x32xf32>
    %148 = arith.addf %4, %147 : vector<16x32xf32>
    %c0_51 = arith.constant 0 : index
    %c0_52 = arith.constant 0 : index
    %c0_53 = arith.constant 0 : index
    %149 = vector.load %arg7[%c0_51, %c0_52, %c0_53] : memref<1x1x32xf32, #tpu.memory_space<vmem>>, vector<1x1x32xf32>
    %150 = vector.shape_cast %149 : vector<1x1x32xf32> to vector<1x32xf32>
    %151 = vector.broadcast %150 : vector<1x32xf32> to vector<16x32xf32>
    %152 = arith.addf %148, %151 : vector<16x32xf32>
    %c0_54 = arith.constant 0 : index
    %c0_55 = arith.constant 0 : index
    %c0_56 = arith.constant 0 : index
    %153 = vector.load %arg8[%c0_54, %c0_55, %c0_56] : memref<1x1x32xf32, #tpu.memory_space<vmem>>, vector<1x1x32xf32>
    %154 = vector.shape_cast %153 : vector<1x1x32xf32> to vector<1x32xf32>
    %c0_57 = arith.constant 0 : index
    %c0_58 = arith.constant 0 : index
    %c0_59 = arith.constant 0 : index
    %155 = vector.load %arg9[%c0_57, %c0_58, %c0_59] : memref<1x1x32xf32, #tpu.memory_space<vmem>>, vector<1x1x32xf32>
    %156 = vector.shape_cast %155 : vector<1x1x32xf32> to vector<1x32xf32>
    %cst_60 = arith.constant dense<0.000000e+00> : vector<16xf32>
    %157 = vector.multi_reduction <add>, %152, %cst_60 [1] : vector<16x32xf32> to vector<16xf32>
    %158 = vector.shape_cast %157 : vector<16xf32> to vector<16x1xf32>
    %cst_61 = arith.constant 3.200000e+01 : f32
    %159 = vector.broadcast %cst_61 : f32 to vector<16x1xf32>
    %160 = arith.divf %158, %159 : vector<16x1xf32>
    %161 = vector.broadcast %160 : vector<16x1xf32> to vector<16x32xf32>
    %162 = arith.subf %152, %161 : vector<16x32xf32>
    %163 = arith.mulf %162, %162 : vector<16x32xf32>
    %cst_62 = arith.constant dense<0.000000e+00> : vector<16xf32>
    %164 = vector.multi_reduction <add>, %163, %cst_62 [1] : vector<16x32xf32> to vector<16xf32>
    %165 = vector.shape_cast %164 : vector<16xf32> to vector<16x1xf32>
    %cst_63 = arith.constant 3.200000e+01 : f32
    %166 = vector.broadcast %cst_63 : f32 to vector<16x1xf32>
    %167 = arith.divf %165, %166 : vector<16x1xf32>
    %168 = vector.broadcast %160 : vector<16x1xf32> to vector<16x32xf32>
    %169 = arith.subf %152, %168 : vector<16x32xf32>
    %cst_64 = arith.constant 9.99999974E-6 : f32
    %170 = vector.broadcast %cst_64 : f32 to vector<16x1xf32>
    %171 = arith.addf %167, %170 : vector<16x1xf32>
    %172 = math.rsqrt %171 : vector<16x1xf32>
    %173 = vector.broadcast %172 : vector<16x1xf32> to vector<16x32xf32>
    %174 = arith.mulf %169, %173 : vector<16x32xf32>
    %175 = vector.broadcast %154 : vector<1x32xf32> to vector<16x32xf32>
    %176 = arith.mulf %174, %175 : vector<16x32xf32>
    %177 = vector.broadcast %156 : vector<1x32xf32> to vector<16x32xf32>
    %178 = arith.addf %176, %177 : vector<16x32xf32>
    %179 = arith.truncf %178 : vector<16x32xf32> to vector<16x32xbf16>
    %c0_65 = arith.constant 0 : index
    %c0_66 = arith.constant 0 : index
    %c0_67 = arith.constant 0 : index
    %180 = vector.load %arg10[%c0_65, %c0_66, %c0_67] : memref<1x32x64xbf16, #tpu.memory_space<vmem>>, vector<1x32x64xbf16>
    %181 = vector.shape_cast %180 : vector<1x32x64xbf16> to vector<32x64xbf16>
    %cst_68 = arith.constant dense<0.000000e+00> : vector<16x64xf32>
    %182 = tpu.matmul %179, %181, %cst_68 {dimension_numbers = #tpu.dot_dimension_numbers<[1], [0], [0], [1], [0, 0, 1, 1], [], []>} : vector<16x32xbf16>, vector<32x64xbf16>, vector<16x64xf32> -> vector<16x64xf32>
    %c0_69 = arith.constant 0 : index
    %c0_70 = arith.constant 0 : index
    %c0_71 = arith.constant 0 : index
    %183 = vector.load %arg11[%c0_69, %c0_70, %c0_71] : memref<1x1x64xf32, #tpu.memory_space<vmem>>, vector<1x1x64xf32>
    %184 = vector.shape_cast %183 : vector<1x1x64xf32> to vector<1x64xf32>
    %185 = vector.broadcast %184 : vector<1x64xf32> to vector<16x64xf32>
    %186 = arith.addf %182, %185 : vector<16x64xf32>
    %cst_72 = arith.constant 5.000000e-01 : f32
    %187 = vector.broadcast %cst_72 : f32 to vector<16x64xf32>
    %188 = arith.mulf %187, %186 : vector<16x64xf32>
    %cst_73 = arith.constant 0.707106769 : f32
    %189 = vector.broadcast %cst_73 : f32 to vector<16x64xf32>
    %190 = arith.mulf %186, %189 : vector<16x64xf32>
    %191 = math.absf %190 : vector<16x64xf32>
    %cst_74 = arith.constant 0.327591091 : f32
    %192 = vector.broadcast %cst_74 : f32 to vector<16x64xf32>
    %193 = arith.mulf %192, %191 : vector<16x64xf32>
    %cst_75 = arith.constant 1.000000e+00 : f32
    %194 = vector.broadcast %cst_75 : f32 to vector<16x64xf32>
    %195 = arith.addf %194, %193 : vector<16x64xf32>
    %cst_76 = arith.constant 1.000000e+00 : f32
    %196 = vector.broadcast %cst_76 : f32 to vector<16x64xf32>
    %197 = arith.divf %196, %195 : vector<16x64xf32>
    %cst_77 = arith.constant 1.06140542 : f32
    %198 = vector.broadcast %cst_77 : f32 to vector<16x64xf32>
    %199 = arith.mulf %198, %197 : vector<16x64xf32>
    %cst_78 = arith.constant -1.45315206 : f32
    %200 = vector.broadcast %cst_78 : f32 to vector<16x64xf32>
    %201 = arith.addf %199, %200 : vector<16x64xf32>
    %202 = arith.mulf %201, %197 : vector<16x64xf32>
    %cst_79 = arith.constant 1.42141378 : f32
    %203 = vector.broadcast %cst_79 : f32 to vector<16x64xf32>
    %204 = arith.addf %202, %203 : vector<16x64xf32>
    %205 = arith.mulf %204, %197 : vector<16x64xf32>
    %cst_80 = arith.constant -0.284496725 : f32
    %206 = vector.broadcast %cst_80 : f32 to vector<16x64xf32>
    %207 = arith.addf %205, %206 : vector<16x64xf32>
    %208 = arith.mulf %207, %197 : vector<16x64xf32>
    %cst_81 = arith.constant 0.254829586 : f32
    %209 = vector.broadcast %cst_81 : f32 to vector<16x64xf32>
    %210 = arith.addf %208, %209 : vector<16x64xf32>
    %211 = arith.mulf %210, %197 : vector<16x64xf32>
    %cst_82 = arith.constant 0.000000e+00 : f32
    %212 = vector.broadcast %cst_82 : f32 to vector<16x64xf32>
    %213 = arith.subf %212, %191 : vector<16x64xf32>
    %214 = arith.mulf %213, %191 : vector<16x64xf32>
    %215 = math.exp %214 : vector<16x64xf32>
    %216 = arith.mulf %211, %215 : vector<16x64xf32>
    %cst_83 = arith.constant 1.000000e+00 : f32
    %217 = vector.broadcast %cst_83 : f32 to vector<16x64xf32>
    %218 = arith.subf %217, %216 : vector<16x64xf32>
    %cst_84 = arith.constant 0.000000e+00 : f32
    %219 = vector.broadcast %cst_84 : f32 to vector<16x64xf32>
    %220 = arith.cmpf oge, %190, %219 : vector<16x64xf32>
    %cst_85 = arith.constant 0.000000e+00 : f32
    %221 = vector.broadcast %cst_85 : f32 to vector<16x64xf32>
    %222 = arith.subf %221, %218 : vector<16x64xf32>
    %223 = arith.select %220, %218, %222 : vector<16x64xi1>, vector<16x64xf32>
    %cst_86 = arith.constant 1.000000e+00 : f32
    %224 = vector.broadcast %cst_86 : f32 to vector<16x64xf32>
    %225 = arith.addf %224, %223 : vector<16x64xf32>
    %226 = arith.mulf %188, %225 : vector<16x64xf32>
    %227 = arith.truncf %226 : vector<16x64xf32> to vector<16x64xbf16>
    %c0_87 = arith.constant 0 : index
    %c0_88 = arith.constant 0 : index
    %c0_89 = arith.constant 0 : index
    %228 = vector.load %arg12[%c0_87, %c0_88, %c0_89] : memref<1x64x32xbf16, #tpu.memory_space<vmem>>, vector<1x64x32xbf16>
    %229 = vector.shape_cast %228 : vector<1x64x32xbf16> to vector<64x32xbf16>
    %cst_90 = arith.constant dense<0.000000e+00> : vector<16x32xf32>
    %230 = tpu.matmul %227, %229, %cst_90 {dimension_numbers = #tpu.dot_dimension_numbers<[1], [0], [0], [1], [0, 0, 1, 1], [], []>} : vector<16x64xbf16>, vector<64x32xbf16>, vector<16x32xf32> -> vector<16x32xf32>
    %c0_91 = arith.constant 0 : index
    %c0_92 = arith.constant 0 : index
    %c0_93 = arith.constant 0 : index
    %231 = vector.load %arg13[%c0_91, %c0_92, %c0_93] : memref<1x1x32xf32, #tpu.memory_space<vmem>>, vector<1x1x32xf32>
    %232 = vector.shape_cast %231 : vector<1x1x32xf32> to vector<1x32xf32>
    %233 = vector.broadcast %232 : vector<1x32xf32> to vector<16x32xf32>
    %234 = arith.addf %230, %233 : vector<16x32xf32>
    %235 = arith.addf %152, %234 : vector<16x32xf32>
    %236 = vector.shape_cast %235 : vector<16x32xf32> to vector<2x8x32xf32>
    %c0_94 = arith.constant 0 : index
    %c0_95 = arith.constant 0 : index
    %c0_96 = arith.constant 0 : index
    %237 = vector.load %arg14[%c0_94, %c0_95, %c0_96] : memref<2x8x32xf32, #tpu.memory_space<vmem>>, vector<2x8x32xf32>
    tpu.vector_store %arg14[%c0_94, %c0_95, %c0_96], %236 {strides = array<i32>} : memref<2x8x32xf32, #tpu.memory_space<vmem>>, vector<2x8x32xf32>,
    return
  }
  func.func @transform_0(%arg0: i32, %arg1: i32) -> (i32, i32, i32) {
    %c0_i32 = arith.constant 0 : i32
    %c0_i32_0 = arith.constant 0 : i32
    %c0_i32_1 = arith.constant 0 : i32
    return %arg0, %c0_i32, %c0_i32_0 : i32, i32, i32
  }
  func.func @transform_1(%arg0: i32, %arg1: i32) -> (i32, i32, i32) {
    %c0_i32 = arith.constant 0 : i32
    %c0_i32_0 = arith.constant 0 : i32
    %c0_i32_1 = arith.constant 0 : i32
    return %arg1, %c0_i32, %c0_i32_0 : i32, i32, i32
  }
  func.func @transform_2(%arg0: i32, %arg1: i32) -> (i32, i32, i32) {
    %c0_i32 = arith.constant 0 : i32
    %c0_i32_0 = arith.constant 0 : i32
    %c0_i32_1 = arith.constant 0 : i32
    return %arg1, %c0_i32, %c0_i32_0 : i32, i32, i32
  }
  func.func @transform_3(%arg0: i32, %arg1: i32) -> (i32, i32, i32) {
    %c0_i32 = arith.constant 0 : i32
    %c0_i32_0 = arith.constant 0 : i32
    %c0_i32_1 = arith.constant 0 : i32
    return %arg1, %c0_i32, %c0_i32_0 : i32, i32, i32
  }
  func.func @transform_4(%arg0: i32, %arg1: i32) -> (i32, i32, i32, i32) {
    %c0_i32 = arith.constant 0 : i32
    %c0_i32_0 = arith.constant 0 : i32
    %c0_i32_1 = arith.constant 0 : i32
    %c0_i32_2 = arith.constant 0 : i32
    return %arg1, %c0_i32, %c0_i32_0, %c0_i32_1 : i32, i32, i32, i32
  }
  func.func @transform_5(%arg0: i32, %arg1: i32) -> (i32, i32, i32) {
    %c0_i32 = arith.constant 0 : i32
    %c0_i32_0 = arith.constant 0 : i32
    %c0_i32_1 = arith.constant 0 : i32
    return %arg1, %c0_i32, %c0_i32_0 : i32, i32, i32
  }
  func.func @transform_6(%arg0: i32, %arg1: i32) -> (i32, i32, i32) {
    %c0_i32 = arith.constant 0 : i32
    %c0_i32_0 = arith.constant 0 : i32
    %c0_i32_1 = arith.constant 0 : i32
    return %arg1, %c0_i32, %c0_i32_0 : i32, i32, i32
  }
  func.func @transform_7(%arg0: i32, %arg1: i32) -> (i32, i32, i32) {
    %c0_i32 = arith.constant 0 : i32
    %c0_i32_0 = arith.constant 0 : i32
    %c0_i32_1 = arith.constant 0 : i32
    return %arg1, %c0_i32, %c0_i32_0 : i32, i32, i32
  }
  func.func @transform_8(%arg0: i32, %arg1: i32) -> (i32, i32, i32) {
    %c0_i32 = arith.constant 0 : i32
    %c0_i32_0 = arith.constant 0 : i32
    %c0_i32_1 = arith.constant 0 : i32
    return %arg1, %c0_i32, %c0_i32_0 : i32, i32, i32
  }
  func.func @transform_9(%arg0: i32, %arg1: i32) -> (i32, i32, i32) {
    %c0_i32 = arith.constant 0 : i32
    %c0_i32_0 = arith.constant 0 : i32
    %c0_i32_1 = arith.constant 0 : i32
    return %arg1, %c0_i32, %c0_i32_0 : i32, i32, i32
  }
  func.func @transform_10(%arg0: i32, %arg1: i32) -> (i32, i32, i32) {
    %c0_i32 = arith.constant 0 : i32
    %c0_i32_0 = arith.constant 0 : i32
    %c0_i32_1 = arith.constant 0 : i32
    return %arg1, %c0_i32, %c0_i32_0 : i32, i32, i32
  }
  func.func @transform_11(%arg0: i32, %arg1: i32) -> (i32, i32, i32) {
    %c0_i32 = arith.constant 0 : i32
    %c0_i32_0 = arith.constant 0 : i32
    %c0_i32_1 = arith.constant 0 : i32
    return %arg1, %c0_i32, %c0_i32_0 : i32, i32, i32
  }
  func.func @transform_12(%arg0: i32, %arg1: i32) -> (i32, i32, i32) {
    %c0_i32 = arith.constant 0 : i32
    %c0_i32_0 = arith.constant 0 : i32
    %c0_i32_1 = arith.constant 0 : i32
    return %arg0, %c0_i32, %c0_i32_0 : i32, i32, i32
  }
}

</mosaic_0001>

<llo_original>
// kernel: tpu_custom_call.1
$region0: #{tpu_custom_call.1}
  #allocation0 [shape = 'u32[]', space=smem, size = 0x4, offset = 0x4, fixed_abs, tag = 'smem constant byte address 0x4 - core index']
  #allocation1 [shape = 'u32[144,128]{1,0:T(1,128)}', space=vmem, size = 0x12000, scoped, tag = 'internal scratch']
  %s0 = inlined_call_operand.hbm [shape: f32[2,8,32], index: 0, kind: input, shape index: {}]
  %s1 = inlined_call_operand.vmem [shape: f32[2,1,32], index: 1, kind: input, shape index: {}]
  %s2 = inlined_call_operand.vmem [shape: f32[2,1,32], index: 2, kind: input, shape index: {}]
  %s3 = inlined_call_operand.vmem [shape: bf16[2,32,96], index: 3, kind: input, shape index: {}]
  %s4 = inlined_call_operand.vmem [shape: bf16[2,4,8,32], index: 4, kind: input, shape index: {}]
  %s5 = inlined_call_operand.hbm [shape: f32[2,1,32], index: 5, kind: input, shape index: {}]
  %s6 = inlined_call_operand.hbm [shape: f32[2,1,32], index: 6, kind: input, shape index: {}]
  %s7 = inlined_call_operand.hbm [shape: f32[2,1,32], index: 7, kind: input, shape index: {}]
  %s8 = inlined_call_operand.vmem [shape: bf16[2,32,64], index: 8, kind: input, shape index: {}]
  %s9 = inlined_call_operand.hbm [shape: f32[2,1,64], index: 9, kind: input, shape index: {}]
  %s10 = inlined_call_operand.vmem [shape: bf16[2,64,32], index: 10, kind: input, shape index: {}]
  %s11 = inlined_call_operand.vmem [shape: f32[2,1,32], index: 11, kind: input, shape index: {}]
  %s12 = inlined_call_operand.hbm [shape: f32[2,8,32], index: 12, kind: output, shape index: {}]
  %s13 = sld [smem:[#allocation0]]
  $region105: #{tpu_custom_call.1} parent=0
    _
  %s15 = ssub.s32 1, %s13
  %s16 = scalar_select 0, %s15, %s13
  $region1: #{tpu_custom_call.1} parent=0
    #allocation2 [shape = 'u8[8192]{0}', space=vmem, size = 0x2000, scoped, tag = 'input window, operand 0, single buffered']
    #allocation3 [shape = 's32[2]{0}', space=sflag, size = 0x8, scoped, tag = 'scoped memory for tpu_custom_call.1']
    #allocation4 [shape = 's32[2]{0}', space=sflag, size = 0x8, scoped, tag = 'scoped memory for tpu_custom_call.1']
    #allocation5 [shape = 'u8[1024]{0}', space=vmem, size = 0x400, scoped, tag = 'input window, operand 5']
    #allocation6 [shape = 's32[2]{0}', space=sflag, size = 0x8, scoped, tag = 'scoped memory for tpu_custom_call.1']
    #allocation7 [shape = 'u8[1024]{0}', space=vmem, size = 0x400, scoped, tag = 'input window, operand 6']
    #allocation8 [shape = 'u8[1024]{0}', space=vmem, size = 0x400, scoped, tag = 'input window, operand 7']
    #allocation9 [shape = 's32[2]{0}', space=sflag, size = 0x8, scoped, tag = 'scoped memory for tpu_custom_call.1']
    #allocation10 [shape = 'u8[1024]{0}', space=vmem, size = 0x400, scoped, tag = 'input window, operand 9']
    #allocation11 [shape = 'u8[8192]{0}', space=vmem, size = 0x2000, scoped, tag = 'output window, operand 0, single buffered']
    %17 = vsyncpa [#allocation3], 0
    %18 = vsyncpa [#allocation6], 0
    %s19 = scalar_lea.sflag [#allocation6], 1
    %20 = vsyncpa %s19, 0
    %21 = vsyncpa [#allocation9], 0
    %s22 = scalar_lea.sflag [#allocation9], 1
    %23 = vsyncpa %s22, 0
    %24 = vsyncpa [#allocation4], 0
    loop: start=0, step=1, limit=4
    $region2: #{tpu_custom_call.1} parent=1 // loop_pre_header
      _
    $region3: #{tpu_custom_call.1} parent=1 // loop_header
      %s26 = sphi 0, %s30
      %p27 = scmp.ge.s32.totalorder %s26, 4
      %s33 = sphi 0, %s45
      %s34 = sphi 0, %s41
      %s35 = sphi 0, %s33
      %s36 = sphi 0, %s34
      %s37 = sphi 0, %s35
      %s38 = sphi 0, %s36
      %s48 = sphi 0, %s50
      %s51 = sphi 0, %s48
      %s52 = sphi 0, %s51
      %s68 = sphi 0, %s52
      %s74 = sphi 0, %s76
      %s77 = sphi 0, %s74
      %s78 = sphi 0, %s77
      %s94 = sphi 0, %s78
      %s100 = sphi 0, %s102
      %s103 = sphi 0, %s100
      %s104 = sphi 0, %s103
      %s120 = sphi 0, %s104
      %s126 = sphi 0, %s128
      %s129 = sphi 0, %s126
      %s130 = sphi 0, %s129
      %s146 = sphi 0, %s130
      %s152 = sphi 0, %s154
      %s155 = sphi 0, %s152
      %s156 = sphi 0, %s155
      %s172 = sphi 0, %s156
      %s178 = sphi 0, %s180
      %s181 = sphi 0, %s178
      %s182 = sphi 0, %s181
      %s198 = sphi 0, %s182
      %s204 = sphi 0, %s206
      %s207 = sphi 0, %s204
      %s208 = sphi 0, %s207
      %s224 = sphi 0, %s208
      %s230 = sphi 0, %s232
      %s233 = sphi 0, %s230
      %s234 = sphi 0, %s233
      %s250 = sphi 0, %s234
      %s256 = sphi 0, %s258
      %s259 = sphi 0, %s256
      %s260 = sphi 0, %s259
      %s276 = sphi 0, %s260
      %s282 = sphi 0, %s284
      %s285 = sphi 0, %s282
      %s286 = sphi 0, %s285
      %s302 = sphi 0, %s286
      %s308 = sphi 0, %s310
      %s311 = sphi 0, %s308
      %s312 = sphi 0, %s311
      %s328 = sphi 0, %s312
      %s334 = sphi 0, %s336
      %s337 = sphi 0, %s334
      %s338 = sphi 0, %s337
      %s354 = sphi 0, %s338
      %s360 = sphi 0, %s362
      %s363 = sphi 0, %s360
      %s364 = sphi 0, %s363
      %s380 = sphi 0, %s364
    $region4: #{tpu_custom_call.1} parent=1 // loop_header_branch
      %29 = sbr.rel (%p27) target = $region8
    $region5: #{tpu_custom_call.1} parent=1 // loop_body
      %s31 = ssub.s32 %s26, 1
      %s32 = ssub.s32 %s26, 2
      %s39 = sadd.s32 1, %s34
      %p40 = scmp.ge.s32.totalorder %s39, 2
      %s41 = scalar_select %p40, 0, %s39
      %s42 = sadd.s32 1, %s33
      %s43 = scalar_select %p40, %s42, %s33
      %p44 = scmp.ge.s32.totalorder %s43, 1
      %s45 = scalar_select %p44, 0, %s43
      %s46 = ssub.s32 %s33, %s45
      %p47 = scmp.eq.s32.totalorder %s46, 0
      %s49 = sadd.s32 %s48, 1
      %s50 = scalar_select %p47, %s48, %s49
      %p53 = pneg %p47
      %p54 = scmp.eq.s32.totalorder %s26, 1
      %p55 = por %p53, %p54
      %p56 = scmp.ne.s32.totalorder %s48, %s51
      %p57 = scmp.eq.s32.totalorder %s26, 0
      %p58 = por %p56, %p57
      %p59 = scmp.ne.s32.totalorder %s48, %s51
      %p60 = scmp.eq.s32.totalorder %s31, 1
      %p61 = por %p59, %p60
      %p62 = scmp.ne.s32.totalorder %s51, %s52
      %p63 = scmp.eq.s32.totalorder %s31, 0
      %p64 = por %p62, %p63
      %p65 = scmp.ne.s32.totalorder %s51, %s52
      %p66 = scmp.eq.s32.totalorder %s32, 1
      %p67 = por %p65, %p66
      %p69 = scmp.ne.s32.totalorder %s52, %s68
      %p70 = scmp.eq.s32.totalorder %s32, 0
      %p71 = por %p69, %p70
      %s72 = ssub.s32 %s34, %s41
      %p73 = scmp.eq.s32.totalorder %s72, 0
      %s75 = sadd.s32 %s74, 1
      %s76 = scalar_select %p73, %s74, %s75
      %p79 = pneg %p73
      %p80 = scmp.eq.s32.totalorder %s26, 1
      %p81 = por %p79, %p80
      %p82 = scmp.ne.s32.totalorder %s74, %s77
      %p83 = scmp.eq.s32.totalorder %s26, 0
      %p84 = por %p82, %p83
      %p85 = scmp.ne.s32.totalorder %s74, %s77
      %p86 = scmp.eq.s32.totalorder %s31, 1
      %p87 = por %p85, %p86
      %p88 = scmp.ne.s32.totalorder %s77, %s78
      %p89 = scmp.eq.s32.totalorder %s31, 0
      %p90 = por %p88, %p89
      %p91 = scmp.ne.s32.totalorder %s77, %s78
      %p92 = scmp.eq.s32.totalorder %s32, 1
      %p93 = por %p91, %p92
      %p95 = scmp.ne.s32.totalorder %s78, %s94
      %p96 = scmp.eq.s32.totalorder %s32, 0
      %p97 = por %p95, %p96
      %s98 = ssub.s32 %s34, %s41
      %p99 = scmp.eq.s32.totalorder %s98, 0
      %s101 = sadd.s32 %s100, 1
      %s102 = scalar_select %p99, %s100, %s101
      %p105 = pneg %p99
      %p106 = scmp.eq.s32.totalorder %s26, 1
      %p107 = por %p105, %p106
      %p108 = scmp.ne.s32.totalorder %s100, %s103
      %p109 = scmp.eq.s32.totalorder %s26, 0
      %p110 = por %p108, %p109
      %p111 = scmp.ne.s32.totalorder %s100, %s103
      %p112 = scmp.eq.s32.totalorder %s31, 1
      %p113 = por %p111, %p112
      %p114 = scmp.ne.s32.totalorder %s103, %s104
      %p115 = scmp.eq.s32.totalorder %s31, 0
      %p116 = por %p114, %p115
      %p117 = scmp.ne.s32.totalorder %s103, %s104
      %p118 = scmp.eq.s32.totalorder %s32, 1
      %p119 = por %p117, %p118
      %p121 = scmp.ne.s32.totalorder %s104, %s120
      %p122 = scmp.eq.s32.totalorder %s32, 0
      %p123 = por %p121, %p122
      %s124 = ssub.s32 %s34, %s41
      %p125 = scmp.eq.s32.totalorder %s124, 0
      %s127 = sadd.s32 %s126, 1
      %s128 = scalar_select %p125, %s126, %s127
      %p131 = pneg %p125
      %p132 = scmp.eq.s32.totalorder %s26, 1
      %p133 = por %p131, %p132
      %p134 = scmp.ne.s32.totalorder %s126, %s129
      %p135 = scmp.eq.s32.totalorder %s26, 0
      %p136 = por %p134, %p135
      %p137 = scmp.ne.s32.totalorder %s126, %s129
      %p138 = scmp.eq.s32.totalorder %s31, 1
      %p139 = por %p137, %p138
      %p140 = scmp.ne.s32.totalorder %s129, %s130
      %p141 = scmp.eq.s32.totalorder %s31, 0
      %p142 = por %p140, %p141
      %p143 = scmp.ne.s32.totalorder %s129, %s130
      %p144 = scmp.eq.s32.totalorder %s32, 1
      %p145 = por %p143, %p144
      %p147 = scmp.ne.s32.totalorder %s130, %s146
      %p148 = scmp.eq.s32.totalorder %s32, 0
      %p149 = por %p147, %p148
      %s150 = ssub.s32 %s34, %s41
      %p151 = scmp.eq.s32.totalorder %s150, 0
      %s153 = sadd.s32 %s152, 1
      %s154 = scalar_select %p151, %s152, %s153
      %p157 = pneg %p151
      %p158 = scmp.eq.s32.totalorder %s26, 1
      %p159 = por %p157, %p158
      %p160 = scmp.ne.s32.totalorder %s152, %s155
      %p161 = scmp.eq.s32.totalorder %s26, 0
      %p162 = por %p160, %p161
      %p163 = scmp.ne.s32.totalorder %s152, %s155
      %p164 = scmp.eq.s32.totalorder %s31, 1
      %p165 = por %p163, %p164
      %p166 = scmp.ne.s32.totalorder %s155, %s156
      %p167 = scmp.eq.s32.totalorder %s31, 0
      %p168 = por %p166, %p167
      %p169 = scmp.ne.s32.totalorder %s155, %s156
      %p170 = scmp.eq.s32.totalorder %s32, 1
      %p171 = por %p169, %p170
      %p173 = scmp.ne.s32.totalorder %s156, %s172
      %p174 = scmp.eq.s32.totalorder %s32, 0
      %p175 = por %p173, %p174
      %s176 = ssub.s32 %s34, %s41
      %p177 = scmp.eq.s32.totalorder %s176, 0
      %s179 = sadd.s32 %s178, 1
      %s180 = scalar_select %p177, %s178, %s179
      %p183 = pneg %p177
      %p184 = scmp.eq.s32.totalorder %s26, 1
      %p185 = por %p183, %p184
      %p186 = scmp.ne.s32.totalorder %s178, %s181
      %p187 = scmp.eq.s32.totalorder %s26, 0
      %p188 = por %p186, %p187
      %p189 = scmp.ne.s32.totalorder %s178, %s181
      %p190 = scmp.eq.s32.totalorder %s31, 1
      %p191 = por %p189, %p190
      %p192 = scmp.ne.s32.totalorder %s181, %s182
      %p193 = scmp.eq.s32.totalorder %s31, 0
      %p194 = por %p192, %p193
      %p195 = scmp.ne.s32.totalorder %s181, %s182
      %p196 = scmp.eq.s32.totalorder %s32, 1
      %p197 = por %p195, %p196
      %p199 = scmp.ne.s32.totalorder %s182, %s198
      %p200 = scmp.eq.s32.totalorder %s32, 0
      %p201 = por %p199, %p200
      %s202 = ssub.s32 %s34, %s41
      %p203 = scmp.eq.s32.totalorder %s202, 0
      %s205 = sadd.s32 %s204, 1
      %s206 = scalar_select %p203, %s204, %s205
      %p209 = pneg %p203
      %p210 = scmp.eq.s32.totalorder %s26, 1
      %p211 = por %p209, %p210
      %p212 = scmp.ne.s32.totalorder %s204, %s207
      %p213 = scmp.eq.s32.totalorder %s26, 0
      %p214 = por %p212, %p213
      %p215 = scmp.ne.s32.totalorder %s204, %s207
      %p216 = scmp.eq.s32.totalorder %s31, 1
      %p217 = por %p215, %p216
      %p218 = scmp.ne.s32.totalorder %s207, %s208
      %p219 = scmp.eq.s32.totalorder %s31, 0
      %p220 = por %p218, %p219
      %p221 = scmp.ne.s32.totalorder %s207, %s208
      %p222 = scmp.eq.s32.totalorder %s32, 1
      %p223 = por %p221, %p222
      %p225 = scmp.ne.s32.totalorder %s208, %s224
      %p226 = scmp.eq.s32.totalorder %s32, 0
      %p227 = por %p225, %p226
      %s228 = ssub.s32 %s34, %s41
      %p229 = scmp.eq.s32.totalorder %s228, 0
      %s231 = sadd.s32 %s230, 1
      %s232 = scalar_select %p229, %s230, %s231
      %p235 = pneg %p229
      %p236 = scmp.eq.s32.totalorder %s26, 1
      %p237 = por %p235, %p236
      %p238 = scmp.ne.s32.totalorder %s230, %s233
      %p239 = scmp.eq.s32.totalorder %s26, 0
      %p240 = por %p238, %p239
      %p241 = scmp.ne.s32.totalorder %s230, %s233
      %p242 = scmp.eq.s32.totalorder %s31, 1
      %p243 = por %p241, %p242
      %p244 = scmp.ne.s32.totalorder %s233, %s234
      %p245 = scmp.eq.s32.totalorder %s31, 0
      %p246 = por %p244, %p245
      %p247 = scmp.ne.s32.totalorder %s233, %s234
      %p248 = scmp.eq.s32.totalorder %s32, 1
      %p249 = por %p247, %p248
      %p251 = scmp.ne.s32.totalorder %s234, %s250
      %p252 = scmp.eq.s32.totalorder %s32, 0
      %p253 = por %p251, %p252
      %s254 = ssub.s32 %s34, %s41
      %p255 = scmp.eq.s32.totalorder %s254, 0
      %s257 = sadd.s32 %s256, 1
      %s258 = scalar_select %p255, %s256, %s257
      %p261 = pneg %p255
      %p262 = scmp.eq.s32.totalorder %s26, 1
      %p263 = por %p261, %p262
      %p264 = scmp.ne.s32.totalorder %s256, %s259
      %p265 = scmp.eq.s32.totalorder %s26, 0
      %p266 = por %p264, %p265
      %p267 = scmp.ne.s32.totalorder %s256, %s259
      %p268 = scmp.eq.s32.totalorder %s31, 1
      %p269 = por %p267, %p268
      %p270 = scmp.ne.s32.totalorder %s259, %s260
      %p271 = scmp.eq.s32.totalorder %s31, 0
      %p272 = por %p270, %p271
      %p273 = scmp.ne.s32.totalorder %s259, %s260
      %p274 = scmp.eq.s32.totalorder %s32, 1
      %p275 = por %p273, %p274
      %p277 = scmp.ne.s32.totalorder %s260, %s276
      %p278 = scmp.eq.s32.totalorder %s32, 0
      %p279 = por %p277, %p278
      %s280 = ssub.s32 %s34, %s41
      %p281 = scmp.eq.s32.totalorder %s280, 0
      %s283 = sadd.s32 %s282, 1
      %s284 = scalar_select %p281, %s282, %s283
      %p287 = pneg %p281
      %p288 = scmp.eq.s32.totalorder %s26, 1
      %p289 = por %p287, %p288
      %p290 = scmp.ne.s32.totalorder %s282, %s285
      %p291 = scmp.eq.s32.totalorder %s26, 0
      %p292 = por %p290, %p291
      %p293 = scmp.ne.s32.totalorder %s282, %s285
      %p294 = scmp.eq.s32.totalorder %s31, 1
      %p295 = por %p293, %p294
      %p296 = scmp.ne.s32.totalorder %s285, %s286
      %p297 = scmp.eq.s32.totalorder %s31, 0
      %p298 = por %p296, %p297
      %p299 = scmp.ne.s32.totalorder %s285, %s286
      %p300 = scmp.eq.s32.totalorder %s32, 1
      %p301 = por %p299, %p300
      %p303 = scmp.ne.s32.totalorder %s286, %s302
      %p304 = scmp.eq.s32.totalorder %s32, 0
      %p305 = por %p303, %p304
      %s306 = ssub.s32 %s34, %s41
      %p307 = scmp.eq.s32.totalorder %s306, 0
      %s309 = sadd.s32 %s308, 1
      %s310 = scalar_select %p307, %s308, %s309
      %p313 = pneg %p307
      %p314 = scmp.eq.s32.totalorder %s26, 1
      %p315 = por %p313, %p314
      %p316 = scmp.ne.s32.totalorder %s308, %s311
      %p317 = scmp.eq.s32.totalorder %s26, 0
      %p318 = por %p316, %p317
      %p319 = scmp.ne.s32.totalorder %s308, %s311
      %p320 = scmp.eq.s32.totalorder %s31, 1
      %p321 = por %p319, %p320
      %p322 = scmp.ne.s32.totalorder %s311, %s312
      %p323 = scmp.eq.s32.totalorder %s31, 0
      %p324 = por %p322, %p323
      %p325 = scmp.ne.s32.totalorder %s311, %s312
      %p326 = scmp.eq.s32.totalorder %s32, 1
      %p327 = por %p325, %p326
      %p329 = scmp.ne.s32.totalorder %s312, %s328
      %p330 = scmp.eq.s32.totalorder %s32, 0
      %p331 = por %p329, %p330
      %s332 = ssub.s32 %s34, %s41
      %p333 = scmp.eq.s32.totalorder %s332, 0
      %s335 = sadd.s32 %s334, 1
      %s336 = scalar_select %p333, %s334, %s335
      %p339 = pneg %p333
      %p340 = scmp.eq.s32.totalorder %s26, 1
      %p341 = por %p339, %p340
      %p342 = scmp.ne.s32.totalorder %s334, %s337
      %p343 = scmp.eq.s32.totalorder %s26, 0
      %p344 = por %p342, %p343
      %p345 = scmp.ne.s32.totalorder %s334, %s337
      %p346 = scmp.eq.s32.totalorder %s31, 1
      %p347 = por %p345, %p346
      %p348 = scmp.ne.s32.totalorder %s337, %s338
      %p349 = scmp.eq.s32.totalorder %s31, 0
      %p350 = por %p348, %p349
      %p351 = scmp.ne.s32.totalorder %s337, %s338
      %p352 = scmp.eq.s32.totalorder %s32, 1
      %p353 = por %p351, %p352
      %p355 = scmp.ne.s32.totalorder %s338, %s354
      %p356 = scmp.eq.s32.totalorder %s32, 0
      %p357 = por %p355, %p356
      %s358 = ssub.s32 %s33, %s45
      %p359 = scmp.eq.s32.totalorder %s358, 0
      %s361 = sadd.s32 %s360, 1
      %s362 = scalar_select %p359, %s360, %s361
      %p365 = pneg %p359
      %p366 = scmp.eq.s32.totalorder %s26, 1
      %p367 = por %p365, %p366
      %p368 = scmp.ne.s32.totalorder %s360, %s363
      %p369 = scmp.eq.s32.totalorder %s26, 0
      %p370 = por %p368, %p369
      %p371 = scmp.ne.s32.totalorder %s360, %s363
      %p372 = scmp.eq.s32.totalorder %s31, 1
      %p373 = por %p371, %p372
      %p374 = scmp.ne.s32.totalorder %s363, %s364
      %p375 = scmp.eq.s32.totalorder %s31, 0
      %p376 = por %p374, %p375
      %p377 = scmp.ne.s32.totalorder %s363, %s364
      %p378 = scmp.eq.s32.totalorder %s32, 1
      %p379 = por %p377, %p378
      %p381 = scmp.ne.s32.totalorder %s364, %s380
      %p382 = scmp.eq.s32.totalorder %s32, 0
      %p383 = por %p381, %p382
      %p384 = scmp.le.s32.totalorder 1, %s26
      %p385 = scmp.lt.s32.totalorder %s26, 3
      %p386 = pnand %p384, %p385
      %p387 = pneg %p386
      // Predicated region
      $region9: #{tpu_custom_call.1} parent=5 // pred_check
        _
      $region10: #{tpu_custom_call.1} parent=5 // pred_check_branch
        %389 = sbr.rel (%p386) target = $region12
      $region11: #{tpu_custom_call.1} parent=5 // pred_region
        %s390 = ssub.s32 %s26, 1
        // Predicated region
        $region13: #{tpu_custom_call.1} parent=11 // pred_check
          %p391 = pneg %p64
        $region14: #{tpu_custom_call.1} parent=11 // pred_check_branch
          %393 = sbr.rel (%p391) target = $region16
        $region15: #{tpu_custom_call.1} parent=11 // pred_region
          %s394 = smul.u32 2, %s35
          %s396 = ssub.s32 256, 256
          %397 = vsyncadd [#allocation3], %s396
          %s398 = smul.addr %s394, 128
          %s399 = scalar_lea.hbm %s0, %s398
          %s400 = sshll.u32 [#allocation2], 4
          %s401 = int_to_ptr.vmem [resolvable:$true] %s400
          %406 = dma.hbm_to_vmem [thread:$0]  %s399, 256, %s401, [#allocation3], 128, 128, 8
        $region16: #{tpu_custom_call.1} parent=11 // pred_fallthru
          _
      $region12: #{tpu_custom_call.1} parent=5 // pred_fallthru
        _
      %p407 = scmp.lt.s32.totalorder %s26, 2
      // Predicated region
      $region17: #{tpu_custom_call.1} parent=5 // pred_check
        %p408 = pneg %p407
      $region18: #{tpu_custom_call.1} parent=5 // pred_check_branch
        %410 = sbr.rel (%p408) target = $region20
      $region19: #{tpu_custom_call.1} parent=5 // pred_region
        // Predicated region
        $region21: #{tpu_custom_call.1} parent=19 // pred_check
          %p411 = pneg %p84
        $region22: #{tpu_custom_call.1} parent=19 // pred_check_branch
          %413 = sbr.rel (%p411) target = $region24
        $region23: #{tpu_custom_call.1} parent=19 // pred_region
          %p414 = scmp.lt.s32.totalorder %s34, 1
          %s415 = scalar_select %p414, %s34, 1
          %s416 = scalar_lea.vmem %s1, %s415
        $region24: #{tpu_custom_call.1} parent=19 // pred_fallthru
          _
        // Predicated region
        $region25: #{tpu_custom_call.1} parent=19 // pred_check
          %p417 = pneg %p110
        $region26: #{tpu_custom_call.1} parent=19 // pred_check_branch
          %419 = sbr.rel (%p417) target = $region28
        $region27: #{tpu_custom_call.1} parent=19 // pred_region
          %p420 = scmp.lt.s32.totalorder %s34, 1
          %s421 = scalar_select %p420, %s34, 1
          %s422 = scalar_lea.vmem %s2, %s421
        $region28: #{tpu_custom_call.1} parent=19 // pred_fallthru
          _
        // Predicated region
        $region29: #{tpu_custom_call.1} parent=19 // pred_check
          %p423 = pneg %p136
        $region30: #{tpu_custom_call.1} parent=19 // pred_check_branch
          %425 = sbr.rel (%p423) target = $region32
        $region31: #{tpu_custom_call.1} parent=19 // pred_region
          %p426 = scmp.lt.s32.totalorder %s34, 1
          %s427 = scalar_select %p426, %s34, 1
          %s428 = smul.addr %s427, 4
          %s429 = smul.addr %s428, 4
          %s430 = scalar_lea.vmem %s3, %s429
        $region32: #{tpu_custom_call.1} parent=19 // pred_fallthru
          _
        // Predicated region
        $region33: #{tpu_custom_call.1} parent=19 // pred_check
          %p431 = pneg %p162
        $region34: #{tpu_custom_call.1} parent=19 // pred_check_branch
          %433 = sbr.rel (%p431) target = $region36
        $region35: #{tpu_custom_call.1} parent=19 // pred_region
          %p434 = scmp.lt.s32.totalorder %s34, 1
          %s435 = scalar_select %p434, %s34, 1
          %s436 = smul.addr %s435, 4
          %s437 = smul.addr %s436, 4
          %s438 = scalar_lea.vmem %s4, %s437
        $region36: #{tpu_custom_call.1} parent=19 // pred_fallthru
          _
        // Predicated region
        $region37: #{tpu_custom_call.1} parent=19 // pred_check
          %p439 = pneg %p188
        $region38: #{tpu_custom_call.1} parent=19 // pred_check_branch
          %441 = sbr.rel (%p439) target = $region40
        $region39: #{tpu_custom_call.1} parent=19 // pred_region
          %s442 = sand.u32 %s26, 1
          %s443 = scalar_lea.sflag [#allocation6], %s442
          %s444 = sand.u32 %s178, 1
          %s445 = scalar_lea.vmem [#allocation5], %s444
          %s447 = ssub.s32 16, 16
          %448 = vsyncadd %s443, %s447
          %s449 = smul.addr %s34, 16
          %s450 = scalar_lea.hbm %s5, %s449
          %s452 = sshll.u32 %s445, 4
          %s453 = int_to_ptr.vmem [resolvable:$true] %s452
          %455 = dma.hbm_to_vmem [thread:$0]  %s450, 16, %s453, %s443
        $region40: #{tpu_custom_call.1} parent=19 // pred_fallthru
          _
        // Predicated region
        $region41: #{tpu_custom_call.1} parent=19 // pred_check
          %p456 = pneg %p214
        $region42: #{tpu_custom_call.1} parent=19 // pred_check_branch
          %458 = sbr.rel (%p456) target = $region44
        $region43: #{tpu_custom_call.1} parent=19 // pred_region
          %s459 = sand.u32 %s26, 1
          %s460 = scalar_lea.sflag [#allocation6], %s459
          %s461 = sand.u32 %s204, 1
          %s462 = scalar_lea.vmem [#allocation7], %s461
          %s464 = ssub.s32 16, 16
          %465 = vsyncadd %s460, %s464
          %s466 = smul.addr %s34, 16
          %s467 = scalar_lea.hbm %s6, %s466
          %s469 = sshll.u32 %s462, 4
          %s470 = int_to_ptr.vmem [resolvable:$true] %s469
          %472 = dma.hbm_to_vmem [thread:$0]  %s467, 16, %s470, %s460
        $region44: #{tpu_custom_call.1} parent=19 // pred_fallthru
          _
        // Predicated region
        $region45: #{tpu_custom_call.1} parent=19 // pred_check
          %p473 = pneg %p240
        $region46: #{tpu_custom_call.1} parent=19 // pred_check_branch
          %475 = sbr.rel (%p473) target = $region48
        $region47: #{tpu_custom_call.1} parent=19 // pred_region
          %s476 = sand.u32 %s26, 1
          %s477 = scalar_lea.sflag [#allocation9], %s476
          %s478 = sand.u32 %s230, 1
          %s479 = scalar_lea.vmem [#allocation8], %s478
          %s481 = ssub.s32 16, 16
          %482 = vsyncadd %s477, %s481
          %s483 = smul.addr %s34, 16
          %s484 = scalar_lea.hbm %s7, %s483
          %s486 = sshll.u32 %s479, 4
          %s487 = int_to_ptr.vmem [resolvable:$true] %s486
          %489 = dma.hbm_to_vmem [thread:$0]  %s484, 16, %s487, %s477
        $region48: #{tpu_custom_call.1} parent=19 // pred_fallthru
          _
        // Predicated region
        $region49: #{tpu_custom_call.1} parent=19 // pred_check
          %p490 = pneg %p266
        $region50: #{tpu_custom_call.1} parent=19 // pred_check_branch
          %492 = sbr.rel (%p490) target = $region52
        $region51: #{tpu_custom_call.1} parent=19 // pred_region
          %p493 = scmp.lt.s32.totalorder %s34, 1
          %s494 = scalar_select %p493, %s34, 1
          %s495 = smul.addr %s494, 4
          %s496 = smul.addr %s495, 4
          %s497 = scalar_lea.vmem %s8, %s496
        $region52: #{tpu_custom_call.1} parent=19 // pred_fallthru
          _
        // Predicated region
        $region53: #{tpu_custom_call.1} parent=19 // pred_check
          %p498 = pneg %p292
        $region54: #{tpu_custom_call.1} parent=19 // pred_check_branch
          %500 = sbr.rel (%p498) target = $region56
        $region55: #{tpu_custom_call.1} parent=19 // pred_region
          %s501 = sand.u32 %s26, 1
          %s502 = scalar_lea.sflag [#allocation9], %s501
          %s503 = sand.u32 %s282, 1
          %s504 = scalar_lea.vmem [#allocation10], %s503
          %s506 = ssub.s32 16, 16
          %507 = vsyncadd %s502, %s506
          %s508 = smul.addr %s34, 16
          %s509 = scalar_lea.hbm %s9, %s508
          %s511 = sshll.u32 %s504, 4
          %s512 = int_to_ptr.vmem [resolvable:$true] %s511
          %514 = dma.hbm_to_vmem [thread:$0]  %s509, 16, %s512, %s502
        $region56: #{tpu_custom_call.1} parent=19 // pred_fallthru
          _
        // Predicated region
        $region57: #{tpu_custom_call.1} parent=19 // pred_check
          %p515 = pneg %p318
        $region58: #{tpu_custom_call.1} parent=19 // pred_check_branch
          %517 = sbr.rel (%p515) target = $region60
        $region59: #{tpu_custom_call.1} parent=19 // pred_region
          %p518 = scmp.lt.s32.totalorder %s34, 1
          %s519 = scalar_select %p518, %s34, 1
          %s520 = smul.addr %s519, 8
          %s521 = smul.addr %s520, 4
          %s522 = scalar_lea.vmem %s10, %s521
        $region60: #{tpu_custom_call.1} parent=19 // pred_fallthru
          _
        // Predicated region
        $region61: #{tpu_custom_call.1} parent=19 // pred_check
          %p523 = pneg %p344
        $region62: #{tpu_custom_call.1} parent=19 // pred_check_branch
          %525 = sbr.rel (%p523) target = $region64
        $region63: #{tpu_custom_call.1} parent=19 // pred_region
          %p526 = scmp.lt.s32.totalorder %s34, 1
          %s527 = scalar_select %p526, %s34, 1
          %s528 = scalar_lea.vmem %s11, %s527
        $region64: #{tpu_custom_call.1} parent=19 // pred_fallthru
          _
      $region20: #{tpu_custom_call.1} parent=5 // pred_fallthru
        _
      %p529 = scmp.le.s32.totalorder 1, %s26
      %p530 = scmp.lt.s32.totalorder %s26, 3
      %p531 = pnand %p529, %p530
      %p532 = pneg %p531
      // Predicated region
      $region65: #{tpu_custom_call.1} parent=5 // pred_check
        _
      $region66: #{tpu_custom_call.1} parent=5 // pred_check_branch
        %534 = sbr.rel (%p531) target = $region68
      $region67: #{tpu_custom_call.1} parent=5 // pred_region
        %s535 = ssub.s32 %s26, 1
        // Predicated region
        $region69: #{tpu_custom_call.1} parent=67 // pred_check
          %p536 = pneg %p64
        $region70: #{tpu_custom_call.1} parent=67 // pred_check_branch
          %538 = sbr.rel (%p536) target = $region72
        $region71: #{tpu_custom_call.1} parent=67 // pred_region
          %539 = dma.done [#allocation3], 256
        $region72: #{tpu_custom_call.1} parent=67 // pred_fallthru
          _
        %s540 = sand.u32 %s31, 1
        %s541 = scalar_lea.sflag [#allocation6], %s540
        %s542 = sand.u32 %s181, 1
        %s543 = scalar_lea.vmem [#allocation5], %s542
        // Predicated region
        $region73: #{tpu_custom_call.1} parent=67 // pred_check
          %p544 = pneg %p194
        $region74: #{tpu_custom_call.1} parent=67 // pred_check_branch
          %546 = sbr.rel (%p544) target = $region76
        $region75: #{tpu_custom_call.1} parent=67 // pred_region
          %547 = dma.done %s541, 16
        $region76: #{tpu_custom_call.1} parent=67 // pred_fallthru
          _
        %s548 = sand.u32 %s31, 1
        %s549 = scalar_lea.sflag [#allocation6], %s548
        %s550 = sand.u32 %s207, 1
        %s551 = scalar_lea.vmem [#allocation7], %s550
        // Predicated region
        $region77: #{tpu_custom_call.1} parent=67 // pred_check
          %p552 = pneg %p220
        $region78: #{tpu_custom_call.1} parent=67 // pred_check_branch
          %554 = sbr.rel (%p552) target = $region80
        $region79: #{tpu_custom_call.1} parent=67 // pred_region
          %555 = dma.done %s549, 16
        $region80: #{tpu_custom_call.1} parent=67 // pred_fallthru
          _
        %s556 = sand.u32 %s31, 1
        %s557 = scalar_lea.sflag [#allocation9], %s556
        %s558 = sand.u32 %s233, 1
        %s559 = scalar_lea.vmem [#allocation8], %s558
        // Predicated region
        $region81: #{tpu_custom_call.1} parent=67 // pred_check
          %p560 = pneg %p246
        $region82: #{tpu_custom_call.1} parent=67 // pred_check_branch
          %562 = sbr.rel (%p560) target = $region84
        $region83: #{tpu_custom_call.1} parent=67 // pred_region
          %563 = dma.done %s557, 16
        $region84: #{tpu_custom_call.1} parent=67 // pred_fallthru
          _
        %s564 = sand.u32 %s31, 1
        %s565 = scalar_lea.sflag [#allocation9], %s564
        %s566 = sand.u32 %s285, 1
        %s567 = scalar_lea.vmem [#allocation10], %s566
        // Predicated region
        $region85: #{tpu_custom_call.1} parent=67 // pred_check
          %p568 = pneg %p298
        $region86: #{tpu_custom_call.1} parent=67 // pred_check_branch
          %570 = sbr.rel (%p568) target = $region88
        $region87: #{tpu_custom_call.1} parent=67 // pred_region
          %571 = dma.done %s565, 16
        $region88: #{tpu_custom_call.1} parent=67 // pred_fallthru
          _
        %p572 = pneg %p64
        %p573 = pneg %p61
        %p574 = scmp.lt.s32.totalorder %s36, 1
        %s575 = scalar_select %p574, %s36, 1
        %s576 = scalar_lea.vmem %s1, %s575
        %p577 = pneg %p90
        %p578 = pneg %p87
        %p579 = scmp.lt.s32.totalorder %s36, 1
        %s580 = scalar_select %p579, %s36, 1
        %s581 = scalar_lea.vmem %s2, %s580
        %p582 = pneg %p116
        %p583 = pneg %p113
        %p584 = scmp.lt.s32.totalorder %s36, 1
        %s585 = scalar_select %p584, %s36, 1
        %s586 = smul.addr %s585, 4
        %s587 = smul.addr %s586, 4
        %s588 = scalar_lea.vmem %s3, %s587
        %p589 = pneg %p142
        %p590 = pneg %p139
        %p591 = scmp.lt.s32.totalorder %s36, 1
        %s592 = scalar_select %p591, %s36, 1
        %s593 = smul.addr %s592, 4
        %s594 = smul.addr %s593, 4
        %s595 = scalar_lea.vmem %s4, %s594
        %p596 = pneg %p168
        %p597 = pneg %p165
        %s598 = sand.u32 %s31, 1
        %s599 = scalar_lea.sflag [#allocation6], %s598
        %s600 = sand.u32 %s181, 1
        %s601 = scalar_lea.vmem [#allocation5], %s600
        %p602 = pneg %p194
        %p603 = pneg %p191
        %s604 = sand.u32 %s31, 1
        %s605 = scalar_lea.sflag [#allocation6], %s604
        %s606 = sand.u32 %s207, 1
        %s607 = scalar_lea.vmem [#allocation7], %s606
        %p608 = pneg %p220
        %p609 = pneg %p217
        %s610 = sand.u32 %s31, 1
        %s611 = scalar_lea.sflag [#allocation9], %s610
        %s612 = sand.u32 %s233, 1
        %s613 = scalar_lea.vmem [#allocation8], %s612
        %p614 = pneg %p246
        %p615 = pneg %p243
        %p616 = scmp.lt.s32.totalorder %s36, 1
        %s617 = scalar_select %p616, %s36, 1
        %s618 = smul.addr %s617, 4
        %s619 = smul.addr %s618, 4
        %s620 = scalar_lea.vmem %s8, %s619
        %p621 = pneg %p272
        %p622 = pneg %p269
        %s623 = sand.u32 %s31, 1
        %s624 = scalar_lea.sflag [#allocation9], %s623
        %s625 = sand.u32 %s285, 1
        %s626 = scalar_lea.vmem [#allocation10], %s625
        %p627 = pneg %p298
        %p628 = pneg %p295
        %p629 = scmp.lt.s32.totalorder %s36, 1
        %s630 = scalar_select %p629, %s36, 1
        %s631 = smul.addr %s630, 8
        %s632 = smul.addr %s631, 4
        %s633 = scalar_lea.vmem %s10, %s632
        %p634 = pneg %p324
        %p635 = pneg %p321
        %p636 = scmp.lt.s32.totalorder %s36, 1
        %s637 = scalar_select %p636, %s36, 1
        %s638 = scalar_lea.vmem %s11, %s637
        %p639 = pneg %p350
        %p640 = pneg %p347
        %p641 = pneg %p376
        %p642 = pneg %p373
        %s643 = smul.u32 2, %s35
        %p644 = scmp.lt.s32.totalorder %s36, 1
        %s645 = scalar_select %p644, %s36, 1
        %s646 = scalar_lea.vmem %s1, %s645
        %p647 = scmp.lt.s32.totalorder %s36, 1
        %s648 = scalar_select %p647, %s36, 1
        %s649 = scalar_lea.vmem %s2, %s648
        %p650 = scmp.lt.s32.totalorder %s36, 1
        %s651 = scalar_select %p650, %s36, 1
        %s652 = smul.addr %s651, 4
        %s653 = smul.addr %s652, 4
        %s654 = scalar_lea.vmem %s3, %s653
        %p655 = scmp.lt.s32.totalorder %s36, 1
        %s656 = scalar_select %p655, %s36, 1
        %s657 = smul.addr %s656, 4
        %s658 = smul.addr %s657, 4
        %s659 = scalar_lea.vmem %s4, %s658
        %p660 = scmp.lt.s32.totalorder %s36, 1
        %s661 = scalar_select %p660, %s36, 1
        %s662 = smul.addr %s661, 4
        %s663 = smul.addr %s662, 4
        %s664 = scalar_lea.vmem %s8, %s663
        %p665 = scmp.lt.s32.totalorder %s36, 1
        %s666 = scalar_select %p665, %s36, 1
        %s667 = smul.addr %s666, 8
        %s668 = smul.addr %s667, 4
        %s669 = scalar_lea.vmem %s10, %s668
        %p670 = scmp.lt.s32.totalorder %s36, 1
        %s671 = scalar_select %p670, %s36, 1
        %s672 = scalar_lea.vmem %s11, %s671
        %s673 = smul.u32 2, %s35
        %p675 = scmp.eq.s32.totalorder %s36, 0
        // Predicated region
        $region89: #{tpu_custom_call.1} parent=67 // pred_check
          %p676 = pneg %p675
        $region90: #{tpu_custom_call.1} parent=67 // pred_check_branch
          %678 = sbr.rel (%p676) target = $region92
        $region91: #{tpu_custom_call.1} parent=67 // pred_region
          %v679 = vld [vmem:[#allocation2] sm:$0xff]
          %v680 = vld [vmem:[#allocation2 + $0x8] sm:$0xff]
          %vm681 = vcmask 261120
          %682 = vst.msk [vmem:[#allocation11] sm:$0xff] %vm681, %v679
          %683 = vst.msk [vmem:[#allocation11 + $0x8] sm:$0xff] %vm681, %v680
        $region92: #{tpu_custom_call.1} parent=67 // pred_fallthru
          _
        %v684 = vld [vmem:[#allocation11] sm:$0xff]
        %v685 = vld [vmem:[#allocation11 + $0x8] sm:$0xff]
        %v686 = vld [vmem:[%s646] sm:$0x1]
        %v687 = vld [vmem:[%s649] sm:$0x1]
        %vm688 = vcmask 261120
        %v689 = vsel %vm688, %v684, 0.0
        %690 = vadd.xlane.f32.xlu0 %v689
        %v691 = vpop.xlane.xlu0 %690
        %v692 = vsel %vm688, %v685, 0.0
        %693 = vadd.xlane.f32.xlu0 %v692
        %v694 = vpop.xlane.xlu0 %693
        %v695 = vrcp.pop 32.0
        %v696 = vmul.f32 %v691, %v695
        %v697 = vmul.f32 %v694, %v695
        %v698 = vsub.f32 %v684, %v696
        %v699 = vsub.f32 %v685, %v697
        %v700 = vmul.f32 %v698, %v698
        %v701 = vmul.f32 %v699, %v699
        %v702 = vsel %vm688, %v700, 0.0
        %703 = vadd.xlane.f32.xlu0 %v702
        %v704 = vpop.xlane.xlu0 %703
        %v705 = vsel %vm688, %v701, 0.0
        %706 = vadd.xlane.f32.xlu0 %v705
        %v707 = vpop.xlane.xlu0 %706
        %v708 = vmul.f32 %v704, %v695
        %v709 = vmul.f32 %v707, %v695
        %v710 = vadd.f32 %v708, 1e-05
        %v711 = vadd.f32 %v709, 1e-05
        %v712 = vrsqrt.pop %v710
        %v713 = vrsqrt.pop %v711
        %v714 = vmul.f32 %v698, %v712
        %v715 = vmul.f32 %v699, %v713
        %v717 = vlaneseq
        %v718 = vshrl.u32 %v717, 7
        %v719 = vsub.s32 0, %v718
        %v720 = vrot.slane %v686, %v719
        %v722 = vmul.f32 %v714, %v720
        %v723 = vmul.f32 %v715, %v720
        %v725 = vlaneseq
        %v726 = vshrl.u32 %v725, 7
        %v727 = vsub.s32 0, %v726
        %v728 = vrot.slane %v687, %v727
        %v730 = vadd.f32 %v722, %v728
        %v731 = vadd.f32 %v723, %v728
        %v732 = vpack.c.bf16 %v731, %v730
        %v733 = vld [vmem:[%s654] sm:$0xf]
        %v734 = vld [vmem:[%s654 + $0x4] sm:$0xf]
        %v735 = vld [vmem:[%s654 + $0x8] sm:$0xf]
        %v736 = vld [vmem:[%s654 + $0xc] sm:$0xf]
        %v741 = vunpack.c.l.b16 %v733
        %v742 = vunpack.c.l.b16 %v734
        %v743 = vunpack.c.l.b16 %v735
        %v744 = vunpack.c.l.b16 %v736
        %v745 = vpack.c.b16 %v742, %v741
        %v746 = vpack.c.b16 %v744, %v743
        %v750 = vsel %vm688, %v732, 0
        %752 = vmatprep.subr.bf16.mxu0 0
        %753 = vmatpush1.bf16.msra.mxu0 %v745
        %754 = vmatprep.subr.bf16.mxu0 0
        %755 = vmatpush1.bf16.msra.mxu0 %v746
        %756 = vmatprep.subr.bf16.mxu0 0
        %757 = vmatpush1.bf16.msra.mxu0 0
        %758 = vmatprep.subr.bf16.mxu0 0
        %759 = vmatpush1.bf16.msra.mxu0 0
        %760 = vmatprep.subr.bf16.mxu0 0
        %761 = vmatpush1.bf16.msra.mxu0 0
        %762 = vmatprep.subr.bf16.mxu0 0
        %763 = vmatpush1.bf16.msra.mxu0 0
        %764 = vmatprep.subr.bf16.mxu0 0
        %765 = vmatpush1.bf16.msra.mxu0 0
        %766 = vmatprep.subr.bf16.mxu0 0
        %767 = vmatpush1.bf16.msra.mxu0 0
        %768 = vmatprep.subr.bf16.mxu0 0
        %769 = vmatpush1.bf16.msra.mxu0 0
        %770 = vmatprep.subr.bf16.mxu0 0
        %771 = vmatpush1.bf16.msra.mxu0 0
        %772 = vmatprep.subr.bf16.mxu0 0
        %773 = vmatpush1.bf16.msra.mxu0 0
        %774 = vmatprep.subr.bf16.mxu0 0
        %775 = vmatpush1.bf16.msra.mxu0 0
        %776 = vmatprep.subr.bf16.mxu0 0
        %777 = vmatpush1.bf16.msra.mxu0 0
        %778 = vmatprep.subr.bf16.mxu0 0
        %779 = vmatpush1.bf16.msra.mxu0 0
        %780 = vmatprep.subr.bf16.mxu0 0
        %781 = vmatpush1.bf16.msra.mxu0 0
        %782 = vmatprep.subr.bf16.mxu0 0
        %783 = vmatpush1.bf16.msra.mxu0 0
        %784 = vmatprep.mubr.bf16.mxu0 0
        %785 = vmatmul.mubr.bf16.gmra.mrb[0].mxu0 %v750
        %v786 = vpop.f32.mrb[0].mxu0
        %v787 = vadd.f32 0.0, %v786
        %v788 = vpop.f32.mrb[0].mxu0
        %v789 = vpop.f32.mrb[0].mxu0
        %v790 = vadd.f32 0.0, %v789
        %v791 = vpop.f32.mrb[0].mxu0
        %792 = vdwg.mxu0
        %v793 = vpack.c.bf16 %v787, %v787
        %v794 = vpack.c.bf16 %v790, %v790
        %796 = vrot.lane.b32.xlu0 %v793, 96
        %v797 = vpop.permute.xlu0 %796
        %vm798 = vcmask 64512
        %v800 = vsel %vm798, %v793, 0
        %v803 = vsel %vm798, %v797, 0
        %805 = vmatprep.subr.bf16.mxu0 0
        %806 = vmatpush1.bf16.xpose.msra.mxu0 %v803
        %807 = vmatprep.subr.bf16.mxu0 0
        %808 = vmatpush1.bf16.xpose.msra.mxu0 0
        %809 = vmatprep.subr.bf16.mxu0 0
        %810 = vmatpush1.bf16.xpose.msra.mxu0 0
        %811 = vmatprep.subr.bf16.mxu0 0
        %812 = vmatpush1.bf16.xpose.msra.mxu0 0
        %813 = vmatprep.subr.bf16.mxu0 0
        %814 = vmatpush1.bf16.xpose.msra.mxu0 0
        %815 = vmatprep.subr.bf16.mxu0 0
        %816 = vmatpush1.bf16.xpose.msra.mxu0 0
        %817 = vmatprep.subr.bf16.mxu0 0
        %818 = vmatpush1.bf16.xpose.msra.mxu0 0
        %819 = vmatprep.subr.bf16.mxu0 0
        %820 = vmatpush1.bf16.xpose.msra.mxu0 0
        %821 = vmatprep.subr.bf16.mxu0 0
        %822 = vmatpush1.bf16.xpose.msra.mxu0 0
        %823 = vmatprep.subr.bf16.mxu0 0
        %824 = vmatpush1.bf16.xpose.msra.mxu0 0
        %825 = vmatprep.subr.bf16.mxu0 0
        %826 = vmatpush1.bf16.xpose.msra.mxu0 0
        %827 = vmatprep.subr.bf16.mxu0 0
        %828 = vmatpush1.bf16.xpose.msra.mxu0 0
        %829 = vmatprep.subr.bf16.mxu0 0
        %830 = vmatpush1.bf16.xpose.msra.mxu0 0
        %831 = vmatprep.subr.bf16.mxu0 0
        %832 = vmatpush1.bf16.xpose.msra.mxu0 0
        %833 = vmatprep.subr.bf16.mxu0 0
        %834 = vmatpush1.bf16.xpose.msra.mxu0 0
        %835 = vmatprep.subr.bf16.mxu0 0
        %836 = vmatpush1.bf16.xpose.msra.mxu0 0
        %837 = vmatprep.mubr.bf16.mxu0 0
        %838 = vmatmul.mubr.bf16.gmra.mrb[0].mxu0 %v800
        %v839 = vpop.f32.mrb[0].mxu0
        %v840 = vadd.f32 0.0, %v839
        %v841 = vpop.f32.mrb[0].mxu0
        %v842 = vpop.f32.mrb[0].mxu0
        %v843 = vpop.f32.mrb[0].mxu0
        %844 = vdwg.mxu0
        %846 = vrot.lane.b32.xlu0 %v794, 96
        %v847 = vpop.permute.xlu0 %846
        %v849 = vsel %vm798, %v794, 0
        %v852 = vsel %vm798, %v847, 0
        %854 = vmatprep.subr.bf16.mxu0 0
        %855 = vmatpush1.bf16.xpose.msra.mxu0 %v852
        %856 = vmatprep.subr.bf16.mxu0 0
        %857 = vmatpush1.bf16.xpose.msra.mxu0 0
        %858 = vmatprep.subr.bf16.mxu0 0
        %859 = vmatpush1.bf16.xpose.msra.mxu0 0
        %860 = vmatprep.subr.bf16.mxu0 0
        %861 = vmatpush1.bf16.xpose.msra.mxu0 0
        %862 = vmatprep.subr.bf16.mxu0 0
        %863 = vmatpush1.bf16.xpose.msra.mxu0 0
        %864 = vmatprep.subr.bf16.mxu0 0
        %865 = vmatpush1.bf16.xpose.msra.mxu0 0
        %866 = vmatprep.subr.bf16.mxu0 0
        %867 = vmatpush1.bf16.xpose.msra.mxu0 0
        %868 = vmatprep.subr.bf16.mxu0 0
        %869 = vmatpush1.bf16.xpose.msra.mxu0 0
        %870 = vmatprep.subr.bf16.mxu0 0
        %871 = vmatpush1.bf16.xpose.msra.mxu0 0
        %872 = vmatprep.subr.bf16.mxu0 0
        %873 = vmatpush1.bf16.xpose.msra.mxu0 0
        %874 = vmatprep.subr.bf16.mxu0 0
        %875 = vmatpush1.bf16.xpose.msra.mxu0 0
        %876 = vmatprep.subr.bf16.mxu0 0
        %877 = vmatpush1.bf16.xpose.msra.mxu0 0
        %878 = vmatprep.subr.bf16.mxu0 0
        %879 = vmatpush1.bf16.xpose.msra.mxu0 0
        %880 = vmatprep.subr.bf16.mxu0 0
        %881 = vmatpush1.bf16.xpose.msra.mxu0 0
        %882 = vmatprep.subr.bf16.mxu0 0
        %883 = vmatpush1.bf16.xpose.msra.mxu0 0
        %884 = vmatprep.subr.bf16.mxu0 0
        %885 = vmatpush1.bf16.xpose.msra.mxu0 0
        %886 = vmatprep.mubr.bf16.mxu0 0
        %887 = vmatmul.mubr.bf16.gmra.mrb[0].mxu0 %v849
        %v888 = vpop.f32.mrb[0].mxu0
        %v889 = vadd.f32 0.0, %v888
        %v890 = vpop.f32.mrb[0].mxu0
        %v891 = vpop.f32.mrb[0].mxu0
        %v892 = vpop.f32.mrb[0].mxu0
        %893 = vdwg.mxu0
        %v894 = vsel %vm798, %v840, -inf
        %895 = vmax.xlane.f32.xlu0 %v894
        %v896 = vpop.xlane.xlu0 %895
        %v897 = vsel %vm798, %v889, -inf
        %898 = vmax.xlane.f32.xlu0 %v897
        %v899 = vpop.xlane.xlu0 %898
        %v900 = vsub.f32 %v840, %v896
        %v901 = vsub.f32 %v889, %v899
        %v902 = vmul.f32 %v900, 1.442695
        %v903 = vpow.pop %v902
        %v904 = vmul.f32 %v901, 1.442695
        %v905 = vpow.pop %v904
        %v906 = vsel %vm798, %v903, 0.0
        %907 = vadd.xlane.f32.xlu0 %v906
        %v908 = vpop.xlane.xlu0 %907
        %v909 = vsel %vm798, %v905, 0.0
        %910 = vadd.xlane.f32.xlu0 %v909
        %v911 = vpop.xlane.xlu0 %910
        %v912 = vrcp.pop %v908
        %v913 = vrcp.pop %v911
        %v914 = vmul.f32 %v903, %v912
        %v915 = vmul.f32 %v905, %v913
        %v916 = vpack.c.bf16 %v914, %v914
        %v917 = vpack.c.bf16 %v915, %v915
        %918 = vrot.lane.b32.xlu0 %v793, 64
        %v919 = vpop.permute.xlu0 %918
        %v921 = vsel %vm798, %v916, 0
        %vm923 = vcmask 1043456
        %v925 = vsel %vm923, %v919, 0
        %927 = vmatprep.subr.bf16.mxu0 0
        %928 = vmatpush1.bf16.msra.mxu0 %v925
        %929 = vmatprep.subr.bf16.mxu0 0
        %930 = vmatpush1.bf16.msra.mxu0 0
        %931 = vmatprep.subr.bf16.mxu0 0
        %932 = vmatpush1.bf16.msra.mxu0 0
        %933 = vmatprep.subr.bf16.mxu0 0
        %934 = vmatpush1.bf16.msra.mxu0 0
        %935 = vmatprep.subr.bf16.mxu0 0
        %936 = vmatpush1.bf16.msra.mxu0 0
        %937 = vmatprep.subr.bf16.mxu0 0
        %938 = vmatpush1.bf16.msra.mxu0 0
        %939 = vmatprep.subr.bf16.mxu0 0
        %940 = vmatpush1.bf16.msra.mxu0 0
        %941 = vmatprep.subr.bf16.mxu0 0
        %942 = vmatpush1.bf16.msra.mxu0 0
        %943 = vmatprep.subr.bf16.mxu0 0
        %944 = vmatpush1.bf16.msra.mxu0 0
        %945 = vmatprep.subr.bf16.mxu0 0
        %946 = vmatpush1.bf16.msra.mxu0 0
        %947 = vmatprep.subr.bf16.mxu0 0
        %948 = vmatpush1.bf16.msra.mxu0 0
        %949 = vmatprep.subr.bf16.mxu0 0
        %950 = vmatpush1.bf16.msra.mxu0 0
        %951 = vmatprep.subr.bf16.mxu0 0
        %952 = vmatpush1.bf16.msra.mxu0 0
        %953 = vmatprep.subr.bf16.mxu0 0
        %954 = vmatpush1.bf16.msra.mxu0 0
        %955 = vmatprep.subr.bf16.mxu0 0
        %956 = vmatpush1.bf16.msra.mxu0 0
        %957 = vmatprep.subr.bf16.mxu0 0
        %958 = vmatpush1.bf16.msra.mxu0 0
        %959 = vmatprep.mubr.bf16.mxu0 0
        %960 = vmatmul.mubr.bf16.gmra.mrb[0].mxu0 %v921
        %v961 = vpop.f32.mrb[0].mxu0
        %v962 = vadd.f32 0.0, %v961
        %v963 = vpop.f32.mrb[0].mxu0
        %v964 = vpop.f32.mrb[0].mxu0
        %v965 = vpop.f32.mrb[0].mxu0
        %966 = vdwg.mxu0
        %967 = vrot.lane.b32.xlu0 %v794, 64
        %v968 = vpop.permute.xlu0 %967
        %v970 = vsel %vm798, %v917, 0
        %v973 = vsel %vm923, %v968, 0
        %975 = vmatprep.subr.bf16.mxu0 0
        %976 = vmatpush1.bf16.msra.mxu0 %v973
        %977 = vmatprep.subr.bf16.mxu0 0
        %978 = vmatpush1.bf16.msra.mxu0 0
        %979 = vmatprep.subr.bf16.mxu0 0
        %980 = vmatpush1.bf16.msra.mxu0 0
        %981 = vmatprep.subr.bf16.mxu0 0
        %982 = vmatpush1.bf16.msra.mxu0 0
        %983 = vmatprep.subr.bf16.mxu0 0
        %984 = vmatpush1.bf16.msra.mxu0 0
        %985 = vmatprep.subr.bf16.mxu0 0
        %986 = vmatpush1.bf16.msra.mxu0 0
        %987 = vmatprep.subr.bf16.mxu0 0
        %988 = vmatpush1.bf16.msra.mxu0 0
        %989 = vmatprep.subr.bf16.mxu0 0
        %990 = vmatpush1.bf16.msra.mxu0 0
        %991 = vmatprep.subr.bf16.mxu0 0
        %992 = vmatpush1.bf16.msra.mxu0 0
        %993 = vmatprep.subr.bf16.mxu0 0
        %994 = vmatpush1.bf16.msra.mxu0 0
        %995 = vmatprep.subr.bf16.mxu0 0
        %996 = vmatpush1.bf16.msra.mxu0 0
        %997 = vmatprep.subr.bf16.mxu0 0
        %998 = vmatpush1.bf16.msra.mxu0 0
        %999 = vmatprep.subr.bf16.mxu0 0
        %1000 = vmatpush1.bf16.msra.mxu0 0
        %1001 = vmatprep.subr.bf16.mxu0 0
        %1002 = vmatpush1.bf16.msra.mxu0 0
        %1003 = vmatprep.subr.bf16.mxu0 0
        %1004 = vmatpush1.bf16.msra.mxu0 0
        %1005 = vmatprep.subr.bf16.mxu0 0
        %1006 = vmatpush1.bf16.msra.mxu0 0
        %1007 = vmatprep.mubr.bf16.mxu0 0
        %1008 = vmatmul.mubr.bf16.gmra.mrb[0].mxu0 %v970
        %v1009 = vpop.f32.mrb[0].mxu0
        %v1010 = vadd.f32 0.0, %v1009
        %v1011 = vpop.f32.mrb[0].mxu0
        %v1012 = vpop.f32.mrb[0].mxu0
        %v1013 = vpop.f32.mrb[0].mxu0
        %1014 = vdwg.mxu0
        %v1015 = vpack.c.bf16 %v1010, %v962
        %v1016 = vld [vmem:[%s659] sm:$0xf]
        %1017 = vrot.lane.b32.xlu0 %v793, 120
        %v1018 = vpop.permute.xlu0 %1017
        %1019 = vrot.lane.b32.xlu0 %v793, 88
        %v1020 = vpop.permute.xlu0 %1019
        %v1022 = vsel %vm798, %v1018, 0
        %v1025 = vsel %vm798, %v1020, 0
        %1027 = vmatprep.subr.bf16.mxu0 0
        %1028 = vmatpush1.bf16.xpose.msra.mxu0 %v1025
        %1029 = vmatprep.subr.bf16.mxu0 0
        %1030 = vmatpush1.bf16.xpose.msra.mxu0 0
        %1031 = vmatprep.subr.bf16.mxu0 0
        %1032 = vmatpush1.bf16.xpose.msra.mxu0 0
        %1033 = vmatprep.subr.bf16.mxu0 0
        %1034 = vmatpush1.bf16.xpose.msra.mxu0 0
        %1035 = vmatprep.subr.bf16.mxu0 0
        %1036 = vmatpush1.bf16.xpose.msra.mxu0 0
        %1037 = vmatprep.subr.bf16.mxu0 0
        %1038 = vmatpush1.bf16.xpose.msra.mxu0 0
        %1039 = vmatprep.subr.bf16.mxu0 0
        %1040 = vmatpush1.bf16.xpose.msra.mxu0 0
        %1041 = vmatprep.subr.bf16.mxu0 0
        %1042 = vmatpush1.bf16.xpose.msra.mxu0 0
        %1043 = vmatprep.subr.bf16.mxu0 0
        %1044 = vmatpush1.bf16.xpose.msra.mxu0 0
        %1045 = vmatprep.subr.bf16.mxu0 0
        %1046 = vmatpush1.bf16.xpose.msra.mxu0 0
        %1047 = vmatprep.subr.bf16.mxu0 0
        %1048 = vmatpush1.bf16.xpose.msra.mxu0 0
        %1049 = vmatprep.subr.bf16.mxu0 0
        %1050 = vmatpush1.bf16.xpose.msra.mxu0 0
        %1051 = vmatprep.subr.bf16.mxu0 0
        %1052 = vmatpush1.bf16.xpose.msra.mxu0 0
        %1053 = vmatprep.subr.bf16.mxu0 0
        %1054 = vmatpush1.bf16.xpose.msra.mxu0 0
        %1055 = vmatprep.subr.bf16.mxu0 0
        %1056 = vmatpush1.bf16.xpose.msra.mxu0 0
        %1057 = vmatprep.subr.bf16.mxu0 0
        %1058 = vmatpush1.bf16.xpose.msra.mxu0 0
        %1059 = vmatprep.mubr.bf16.mxu0 0
        %1060 = vmatmul.mubr.bf16.gmra.mrb[0].mxu0 %v1022
        %v1061 = vpop.f32.mrb[0].mxu0
        %v1062 = vadd.f32 0.0, %v1061
        %v1063 = vpop.f32.mrb[0].mxu0
        %v1064 = vpop.f32.mrb[0].mxu0
        %v1065 = vpop.f32.mrb[0].mxu0
        %1066 = vdwg.mxu0
        %1067 = vrot.lane.b32.xlu0 %v794, 120
        %v1068 = vpop.permute.xlu0 %1067
        %1069 = vrot.lane.b32.xlu0 %v794, 88
        %v1070 = vpop.permute.xlu0 %1069
        %v1072 = vsel %vm798, %v1068, 0
        %v1075 = vsel %vm798, %v1070, 0
        %1077 = vmatprep.subr.bf16.mxu0 0
        %1078 = vmatpush1.bf16.xpose.msra.mxu0 %v1075
        %1079 = vmatprep.subr.bf16.mxu0 0
        %1080 = vmatpush1.bf16.xpose.msra.mxu0 0
        %1081 = vmatprep.subr.bf16.mxu0 0
        %1082 = vmatpush1.bf16.xpose.msra.mxu0 0
        %1083 = vmatprep.subr.bf16.mxu0 0
        %1084 = vmatpush1.bf16.xpose.msra.mxu0 0
        %1085 = vmatprep.subr.bf16.mxu0 0
        %1086 = vmatpush1.bf16.xpose.msra.mxu0 0
        %1087 = vmatprep.subr.bf16.mxu0 0
        %1088 = vmatpush1.bf16.xpose.msra.mxu0 0
        %1089 = vmatprep.subr.bf16.mxu0 0
        %1090 = vmatpush1.bf16.xpose.msra.mxu0 0
        %1091 = vmatprep.subr.bf16.mxu0 0
        %1092 = vmatpush1.bf16.xpose.msra.mxu0 0
        %1093 = vmatprep.subr.bf16.mxu0 0
        %1094 = vmatpush1.bf16.xpose.msra.mxu0 0
        %1095 = vmatprep.subr.bf16.mxu0 0
        %1096 = vmatpush1.bf16.xpose.msra.mxu0 0
        %1097 = vmatprep.subr.bf16.mxu0 0
        %1098 = vmatpush1.bf16.xpose.msra.mxu0 0
        %1099 = vmatprep.subr.bf16.mxu0 0
        %1100 = vmatpush1.bf16.xpose.msra.mxu0 0
        %1101 = vmatprep.subr.bf16.mxu0 0
        %1102 = vmatpush1.bf16.xpose.msra.mxu0 0
        %1103 = vmatprep.subr.bf16.mxu0 0
        %1104 = vmatpush1.bf16.xpose.msra.mxu0 0
        %1105 = vmatprep.subr.bf16.mxu0 0
        %1106 = vmatpush1.bf16.xpose.msra.mxu0 0
        %1107 = vmatprep.subr.bf16.mxu0 0
        %1108 = vmatpush1.bf16.xpose.msra.mxu0 0
        %1109 = vmatprep.mubr.bf16.mxu0 0
        %1110 = vmatmul.mubr.bf16.gmra.mrb[0].mxu0 %v1072
        %v1111 = vpop.f32.mrb[0].mxu0
        %v1112 = vadd.f32 0.0, %v1111
        %v1113 = vpop.f32.mrb[0].mxu0
        %v1114 = vpop.f32.mrb[0].mxu0
        %v1115 = vpop.f32.mrb[0].mxu0
        %1116 = vdwg.mxu0
        %v1117 = vsel %vm798, %v1062, -inf
        %1118 = vmax.xlane.f32.xlu0 %v1117
        %v1119 = vpop.xlane.xlu0 %1118
        %v1120 = vsel %vm798, %v1112, -inf
        %1121 = vmax.xlane.f32.xlu0 %v1120
        %v1122 = vpop.xlane.xlu0 %1121
        %v1123 = vsub.f32 %v1062, %v1119
        %v1124 = vsub.f32 %v1112, %v1122
        %v1125 = vmul.f32 %v1123, 1.442695
        %v1126 = vpow.pop %v1125
        %v1127 = vmul.f32 %v1124, 1.442695
        %v1128 = vpow.pop %v1127
        %v1129 = vsel %vm798, %v1126, 0.0
        %1130 = vadd.xlane.f32.xlu0 %v1129
        %v1131 = vpop.xlane.xlu0 %1130
        %v1132 = vsel %vm798, %v1128, 0.0
        %1133 = vadd.xlane.f32.xlu0 %v1132
        %v1134 = vpop.xlane.xlu0 %1133
        %v1135 = vrcp.pop %v1131
        %v1136 = vrcp.pop %v1134
        %v1137 = vmul.f32 %v1126, %v1135
        %v1138 = vmul.f32 %v1128, %v1136
        %v1139 = vpack.c.bf16 %v1137, %v1137
        %v1140 = vpack.c.bf16 %v1138, %v1138
        %1141 = vrot.lane.b32.xlu0 %v793, 56
        %v1142 = vpop.permute.xlu0 %1141
        %v1144 = vsel %vm798, %v1139, 0
        %v1147 = vsel %vm923, %v1142, 0
        %1149 = vmatprep.subr.bf16.mxu0 0
        %1150 = vmatpush1.bf16.msra.mxu0 %v1147
        %1151 = vmatprep.subr.bf16.mxu0 0
        %1152 = vmatpush1.bf16.msra.mxu0 0
        %1153 = vmatprep.subr.bf16.mxu0 0
        %1154 = vmatpush1.bf16.msra.mxu0 0
        %1155 = vmatprep.subr.bf16.mxu0 0
        %1156 = vmatpush1.bf16.msra.mxu0 0
        %1157 = vmatprep.subr.bf16.mxu0 0
        %1158 = vmatpush1.bf16.msra.mxu0 0
        %1159 = vmatprep.subr.bf16.mxu0 0
        %1160 = vmatpush1.bf16.msra.mxu0 0
        %1161 = vmatprep.subr.bf16.mxu0 0
        %1162 = vmatpush1.bf16.msra.mxu0 0
        %1163 = vmatprep.subr.bf16.mxu0 0
        %1164 = vmatpush1.bf16.msra.mxu0 0
        %1165 = vmatprep.subr.bf16.mxu0 0
        %1166 = vmatpush1.bf16.msra.mxu0 0
        %1167 = vmatprep.subr.bf16.mxu0 0
        %1168 = vmatpush1.bf16.msra.mxu0 0
        %1169 = vmatprep.subr.bf16.mxu0 0
        %1170 = vmatpush1.bf16.msra.mxu0 0
        %1171 = vmatprep.subr.bf16.mxu0 0
        %1172 = vmatpush1.bf16.msra.mxu0 0
        %1173 = vmatprep.subr.bf16.mxu0 0
        %1174 = vmatpush1.bf16.msra.mxu0 0
        %1175 = vmatprep.subr.bf16.mxu0 0
        %1176 = vmatpush1.bf16.msra.mxu0 0
        %1177 = vmatprep.subr.bf16.mxu0 0
        %1178 = vmatpush1.bf16.msra.mxu0 0
        %1179 = vmatprep.subr.bf16.mxu0 0
        %1180 = vmatpush1.bf16.msra.mxu0 0
        %1181 = vmatprep.mubr.bf16.mxu0 0
        %1182 = vmatmul.mubr.bf16.gmra.mrb[0].mxu0 %v1144
        %v1183 = vpop.f32.mrb[0].mxu0
        %v1184 = vadd.f32 0.0, %v1183
        %v1185 = vpop.f32.mrb[0].mxu0
        %v1186 = vpop.f32.mrb[0].mxu0
        %v1187 = vpop.f32.mrb[0].mxu0
        %1188 = vdwg.mxu0
        %1189 = vrot.lane.b32.xlu0 %v794, 56
        %v1190 = vpop.permute.xlu0 %1189
        %v1192 = vsel %vm798, %v1140, 0
        %v1195 = vsel %vm923, %v1190, 0
        %1197 = vmatprep.subr.bf16.mxu0 0
        %1198 = vmatpush1.bf16.msra.mxu0 %v1195
        %1199 = vmatprep.subr.bf16.mxu0 0
        %1200 = vmatpush1.bf16.msra.mxu0 0
        %1201 = vmatprep.subr.bf16.mxu0 0
        %1202 = vmatpush1.bf16.msra.mxu0 0
        %1203 = vmatprep.subr.bf16.mxu0 0
        %1204 = vmatpush1.bf16.msra.mxu0 0
        %1205 = vmatprep.subr.bf16.mxu0 0
        %1206 = vmatpush1.bf16.msra.mxu0 0
        %1207 = vmatprep.subr.bf16.mxu0 0
        %1208 = vmatpush1.bf16.msra.mxu0 0
        %1209 = vmatprep.subr.bf16.mxu0 0
        %1210 = vmatpush1.bf16.msra.mxu0 0
        %1211 = vmatprep.subr.bf16.mxu0 0
        %1212 = vmatpush1.bf16.msra.mxu0 0
        %1213 = vmatprep.subr.bf16.mxu0 0
        %1214 = vmatpush1.bf16.msra.mxu0 0
        %1215 = vmatprep.subr.bf16.mxu0 0
        %1216 = vmatpush1.bf16.msra.mxu0 0
        %1217 = vmatprep.subr.bf16.mxu0 0
        %1218 = vmatpush1.bf16.msra.mxu0 0
        %1219 = vmatprep.subr.bf16.mxu0 0
        %1220 = vmatpush1.bf16.msra.mxu0 0
        %1221 = vmatprep.subr.bf16.mxu0 0
        %1222 = vmatpush1.bf16.msra.mxu0 0
        %1223 = vmatprep.subr.bf16.mxu0 0
        %1224 = vmatpush1.bf16.msra.mxu0 0
        %1225 = vmatprep.subr.bf16.mxu0 0
        %1226 = vmatpush1.bf16.msra.mxu0 0
        %1227 = vmatprep.subr.bf16.mxu0 0
        %1228 = vmatpush1.bf16.msra.mxu0 0
        %1229 = vmatprep.mubr.bf16.mxu0 0
        %1230 = vmatmul.mubr.bf16.gmra.mrb[0].mxu0 %v1192
        %v1231 = vpop.f32.mrb[0].mxu0
        %v1232 = vadd.f32 0.0, %v1231
        %v1233 = vpop.f32.mrb[0].mxu0
        %v1234 = vpop.f32.mrb[0].mxu0
        %v1235 = vpop.f32.mrb[0].mxu0
        %1236 = vdwg.mxu0
        %v1237 = vpack.c.bf16 %v1232, %v1184
        %s1238 = scalar_lea.vmem %s659, 4
        %v1239 = vld [vmem:[%s1238] sm:$0xf]
        %v1241 = vsel %vm798, %v1237, 0
        %v1244 = vsel %vm923, %v1239, 0
        %1246 = vmatprep.subr.bf16.mxu0 0
        %1247 = vmatpush1.bf16.msra.mxu0 %v1244
        %1248 = vmatprep.subr.bf16.mxu0 0
        %1249 = vmatpush1.bf16.msra.mxu0 0
        %1250 = vmatprep.subr.bf16.mxu0 0
        %1251 = vmatpush1.bf16.msra.mxu0 0
        %1252 = vmatprep.subr.bf16.mxu0 0
        %1253 = vmatpush1.bf16.msra.mxu0 0
        %1254 = vmatprep.subr.bf16.mxu0 0
        %1255 = vmatpush1.bf16.msra.mxu0 0
        %1256 = vmatprep.subr.bf16.mxu0 0
        %1257 = vmatpush1.bf16.msra.mxu0 0
        %1258 = vmatprep.subr.bf16.mxu0 0
        %1259 = vmatpush1.bf16.msra.mxu0 0
        %1260 = vmatprep.subr.bf16.mxu0 0
        %1261 = vmatpush1.bf16.msra.mxu0 0
        %1262 = vmatprep.subr.bf16.mxu0 0
        %1263 = vmatpush1.bf16.msra.mxu0 0
        %1264 = vmatprep.subr.bf16.mxu0 0
        %1265 = vmatpush1.bf16.msra.mxu0 0
        %1266 = vmatprep.subr.bf16.mxu0 0
        %1267 = vmatpush1.bf16.msra.mxu0 0
        %1268 = vmatprep.subr.bf16.mxu0 0
        %1269 = vmatpush1.bf16.msra.mxu0 0
        %1270 = vmatprep.subr.bf16.mxu0 0
        %1271 = vmatpush1.bf16.msra.mxu0 0
        %1272 = vmatprep.subr.bf16.mxu0 0
        %1273 = vmatpush1.bf16.msra.mxu0 0
        %1274 = vmatprep.subr.bf16.mxu0 0
        %1275 = vmatpush1.bf16.msra.mxu0 0
        %1276 = vmatprep.subr.bf16.mxu0 0
        %1277 = vmatpush1.bf16.msra.mxu0 0
        %1278 = vmatprep.mubr.bf16.mxu0 0
        %1279 = vmatmul.mubr.bf16.gmra.mrb[0].mxu0 %v1241
        %v1280 = vpop.f32.mrb[0].mxu0
        %v1281 = vadd.f32 0.0, %v1280
        %v1282 = vpop.f32.mrb[0].mxu0
        %v1283 = vpop.f32.mrb[0].mxu0
        %v1284 = vadd.f32 0.0, %v1283
        %v1285 = vpop.f32.mrb[0].mxu0
        %1286 = vdwg.mxu0
        %v1288 = vsel %vm798, %v1015, 0
        %v1291 = vsel %vm923, %v1016, 0
        %1293 = vmatprep.subr.bf16.mxu0 0
        %1294 = vmatpush1.bf16.msra.mxu0 %v1291
        %1295 = vmatprep.subr.bf16.mxu0 0
        %1296 = vmatpush1.bf16.msra.mxu0 0
        %1297 = vmatprep.subr.bf16.mxu0 0
        %1298 = vmatpush1.bf16.msra.mxu0 0
        %1299 = vmatprep.subr.bf16.mxu0 0
        %1300 = vmatpush1.bf16.msra.mxu0 0
        %1301 = vmatprep.subr.bf16.mxu0 0
        %1302 = vmatpush1.bf16.msra.mxu0 0
        %1303 = vmatprep.subr.bf16.mxu0 0
        %1304 = vmatpush1.bf16.msra.mxu0 0
        %1305 = vmatprep.subr.bf16.mxu0 0
        %1306 = vmatpush1.bf16.msra.mxu0 0
        %1307 = vmatprep.subr.bf16.mxu0 0
        %1308 = vmatpush1.bf16.msra.mxu0 0
        %1309 = vmatprep.subr.bf16.mxu0 0
        %1310 = vmatpush1.bf16.msra.mxu0 0
        %1311 = vmatprep.subr.bf16.mxu0 0
        %1312 = vmatpush1.bf16.msra.mxu0 0
        %1313 = vmatprep.subr.bf16.mxu0 0
        %1314 = vmatpush1.bf16.msra.mxu0 0
        %1315 = vmatprep.subr.bf16.mxu0 0
        %1316 = vmatpush1.bf16.msra.mxu0 0
        %1317 = vmatprep.subr.bf16.mxu0 0
        %1318 = vmatpush1.bf16.msra.mxu0 0
        %1319 = vmatprep.subr.bf16.mxu0 0
        %1320 = vmatpush1.bf16.msra.mxu0 0
        %1321 = vmatprep.subr.bf16.mxu0 0
        %1322 = vmatpush1.bf16.msra.mxu0 0
        %1323 = vmatprep.subr.bf16.mxu0 0
        %1324 = vmatpush1.bf16.msra.mxu0 0
        %1325 = vmatprep.mubr.bf16.mxu0 0
        %1326 = vmatmul.mubr.bf16.gmra.mrb[0].mxu0 %v1288
        %v1327 = vpop.f32.mrb[0].mxu0
        %v1328 = vadd.f32 %v1281, %v1327
        %v1329 = vpop.f32.mrb[0].mxu0
        %v1330 = vpop.f32.mrb[0].mxu0
        %v1331 = vadd.f32 %v1284, %v1330
        %v1332 = vpop.f32.mrb[0].mxu0
        %1333 = vdwg.mxu0
        %1334 = vrot.lane.b32.xlu0 %v793, 112
        %v1335 = vpop.permute.xlu0 %1334
        %1336 = vrot.lane.b32.xlu0 %v793, 80
        %v1337 = vpop.permute.xlu0 %1336
        %v1339 = vsel %vm798, %v1335, 0
        %v1342 = vsel %vm798, %v1337, 0
        %1344 = vmatprep.subr.bf16.mxu0 0
        %1345 = vmatpush1.bf16.xpose.msra.mxu0 %v1342
        %1346 = vmatprep.subr.bf16.mxu0 0
        %1347 = vmatpush1.bf16.xpose.msra.mxu0 0
        %1348 = vmatprep.subr.bf16.mxu0 0
        %1349 = vmatpush1.bf16.xpose.msra.mxu0 0
        %1350 = vmatprep.subr.bf16.mxu0 0
        %1351 = vmatpush1.bf16.xpose.msra.mxu0 0
        %1352 = vmatprep.subr.bf16.mxu0 0
        %1353 = vmatpush1.bf16.xpose.msra.mxu0 0
        %1354 = vmatprep.subr.bf16.mxu0 0
        %1355 = vmatpush1.bf16.xpose.msra.mxu0 0
        %1356 = vmatprep.subr.bf16.mxu0 0
        %1357 = vmatpush1.bf16.xpose.msra.mxu0 0
        %1358 = vmatprep.subr.bf16.mxu0 0
        %1359 = vmatpush1.bf16.xpose.msra.mxu0 0
        %1360 = vmatprep.subr.bf16.mxu0 0
        %1361 = vmatpush1.bf16.xpose.msra.mxu0 0
        %1362 = vmatprep.subr.bf16.mxu0 0
        %1363 = vmatpush1.bf16.xpose.msra.mxu0 0
        %1364 = vmatprep.subr.bf16.mxu0 0
        %1365 = vmatpush1.bf16.xpose.msra.mxu0 0
        %1366 = vmatprep.subr.bf16.mxu0 0
        %1367 = vmatpush1.bf16.xpose.msra.mxu0 0
        %1368 = vmatprep.subr.bf16.mxu0 0
        %1369 = vmatpush1.bf16.xpose.msra.mxu0 0
        %1370 = vmatprep.subr.bf16.mxu0 0
        %1371 = vmatpush1.bf16.xpose.msra.mxu0 0
        %1372 = vmatprep.subr.bf16.mxu0 0
        %1373 = vmatpush1.bf16.xpose.msra.mxu0 0
        %1374 = vmatprep.subr.bf16.mxu0 0
        %1375 = vmatpush1.bf16.xpose.msra.mxu0 0
        %1376 = vmatprep.mubr.bf16.mxu0 0
        %1377 = vmatmul.mubr.bf16.gmra.mrb[0].mxu0 %v1339
        %v1378 = vpop.f32.mrb[0].mxu0
        %v1379 = vadd.f32 0.0, %v1378
        %v1380 = vpop.f32.mrb[0].mxu0
        %v1381 = vpop.f32.mrb[0].mxu0
        %v1382 = vpop.f32.mrb[0].mxu0
        %1383 = vdwg.mxu0
        %1384 = vrot.lane.b32.xlu0 %v794, 112
        %v1385 = vpop.permute.xlu0 %1384
        %1386 = vrot.lane.b32.xlu0 %v794, 80
        %v1387 = vpop.permute.xlu0 %1386
        %v1389 = vsel %vm798, %v1385, 0
        %v1392 = vsel %vm798, %v1387, 0
        %1394 = vmatprep.subr.bf16.mxu0 0
        %1395 = vmatpush1.bf16.xpose.msra.mxu0 %v1392
        %1396 = vmatprep.subr.bf16.mxu0 0
        %1397 = vmatpush1.bf16.xpose.msra.mxu0 0
        %1398 = vmatprep.subr.bf16.mxu0 0
        %1399 = vmatpush1.bf16.xpose.msra.mxu0 0
        %1400 = vmatprep.subr.bf16.mxu0 0
        %1401 = vmatpush1.bf16.xpose.msra.mxu0 0
        %1402 = vmatprep.subr.bf16.mxu0 0
        %1403 = vmatpush1.bf16.xpose.msra.mxu0 0
        %1404 = vmatprep.subr.bf16.mxu0 0
        %1405 = vmatpush1.bf16.xpose.msra.mxu0 0
        %1406 = vmatprep.subr.bf16.mxu0 0
        %1407 = vmatpush1.bf16.xpose.msra.mxu0 0
        %1408 = vmatprep.subr.bf16.mxu0 0
        %1409 = vmatpush1.bf16.xpose.msra.mxu0 0
        %1410 = vmatprep.subr.bf16.mxu0 0
        %1411 = vmatpush1.bf16.xpose.msra.mxu0 0
        %1412 = vmatprep.subr.bf16.mxu0 0
        %1413 = vmatpush1.bf16.xpose.msra.mxu0 0
        %1414 = vmatprep.subr.bf16.mxu0 0
        %1415 = vmatpush1.bf16.xpose.msra.mxu0 0
        %1416 = vmatprep.subr.bf16.mxu0 0
        %1417 = vmatpush1.bf16.xpose.msra.mxu0 0
        %1418 = vmatprep.subr.bf16.mxu0 0
        %1419 = vmatpush1.bf16.xpose.msra.mxu0 0
        %1420 = vmatprep.subr.bf16.mxu0 0
        %1421 = vmatpush1.bf16.xpose.msra.mxu0 0
        %1422 = vmatprep.subr.bf16.mxu0 0
        %1423 = vmatpush1.bf16.xpose.msra.mxu0 0
        %1424 = vmatprep.subr.bf16.mxu0 0
        %1425 = vmatpush1.bf16.xpose.msra.mxu0 0
        %1426 = vmatprep.mubr.bf16.mxu0 0
        %1427 = vmatmul.mubr.bf16.gmra.mrb[0].mxu0 %v1389
        %v1428 = vpop.f32.mrb[0].mxu0
        %v1429 = vadd.f32 0.0, %v1428
        %v1430 = vpop.f32.mrb[0].mxu0
        %v1431 = vpop.f32.mrb[0].mxu0
        %v1432 = vpop.f32.mrb[0].mxu0
        %1433 = vdwg.mxu0
        %v1434 = vsel %vm798, %v1379, -inf
        %1435 = vmax.xlane.f32.xlu0 %v1434
        %v1436 = vpop.xlane.xlu0 %1435
        %v1437 = vsel %vm798, %v1429, -inf
        %1438 = vmax.xlane.f32.xlu0 %v1437
        %v1439 = vpop.xlane.xlu0 %1438
        %v1440 = vsub.f32 %v1379, %v1436
        %v1441 = vsub.f32 %v1429, %v1439
        %v1442 = vmul.f32 %v1440, 1.442695
        %v1443 = vpow.pop %v1442
        %v1444 = vmul.f32 %v1441, 1.442695
        %v1445 = vpow.pop %v1444
        %v1446 = vsel %vm798, %v1443, 0.0
        %1447 = vadd.xlane.f32.xlu0 %v1446
        %v1448 = vpop.xlane.xlu0 %1447
        %v1449 = vsel %vm798, %v1445, 0.0
        %1450 = vadd.xlane.f32.xlu0 %v1449
        %v1451 = vpop.xlane.xlu0 %1450
        %v1452 = vrcp.pop %v1448
        %v1453 = vrcp.pop %v1451
        %v1454 = vmul.f32 %v1443, %v1452
        %v1455 = vmul.f32 %v1445, %v1453
        %v1456 = vpack.c.bf16 %v1454, %v1454
        %v1457 = vpack.c.bf16 %v1455, %v1455
        %1458 = vrot.lane.b32.xlu0 %v793, 48
        %v1459 = vpop.permute.xlu0 %1458
        %v1461 = vsel %vm798, %v1456, 0
        %v1464 = vsel %vm923, %v1459, 0
        %1466 = vmatprep.subr.bf16.mxu0 0
        %1467 = vmatpush1.bf16.msra.mxu0 %v1464
        %1468 = vmatprep.subr.bf16.mxu0 0
        %1469 = vmatpush1.bf16.msra.mxu0 0
        %1470 = vmatprep.subr.bf16.mxu0 0
        %1471 = vmatpush1.bf16.msra.mxu0 0
        %1472 = vmatprep.subr.bf16.mxu0 0
        %1473 = vmatpush1.bf16.msra.mxu0 0
        %1474 = vmatprep.subr.bf16.mxu0 0
        %1475 = vmatpush1.bf16.msra.mxu0 0
        %1476 = vmatprep.subr.bf16.mxu0 0
        %1477 = vmatpush1.bf16.msra.mxu0 0
        %1478 = vmatprep.subr.bf16.mxu0 0
        %1479 = vmatpush1.bf16.msra.mxu0 0
        %1480 = vmatprep.subr.bf16.mxu0 0
        %1481 = vmatpush1.bf16.msra.mxu0 0
        %1482 = vmatprep.subr.bf16.mxu0 0
        %1483 = vmatpush1.bf16.msra.mxu0 0
        %1484 = vmatprep.subr.bf16.mxu0 0
        %1485 = vmatpush1.bf16.msra.mxu0 0
        %1486 = vmatprep.subr.bf16.mxu0 0
        %1487 = vmatpush1.bf16.msra.mxu0 0
        %1488 = vmatprep.subr.bf16.mxu0 0
        %1489 = vmatpush1.bf16.msra.mxu0 0
        %1490 = vmatprep.subr.bf16.mxu0 0
        %1491 = vmatpush1.bf16.msra.mxu0 0
        %1492 = vmatprep.subr.bf16.mxu0 0
        %1493 = vmatpush1.bf16.msra.mxu0 0
        %1494 = vmatprep.subr.bf16.mxu0 0
        %1495 = vmatpush1.bf16.msra.mxu0 0
        %1496 = vmatprep.subr.bf16.mxu0 0
        %1497 = vmatpush1.bf16.msra.mxu0 0
        %1498 = vmatprep.mubr.bf16.mxu0 0
        %1499 = vmatmul.mubr.bf16.gmra.mrb[0].mxu0 %v1461
        %v1500 = vpop.f32.mrb[0].mxu0
        %v1501 = vadd.f32 0.0, %v1500
        %v1502 = vpop.f32.mrb[0].mxu0
        %v1503 = vpop.f32.mrb[0].mxu0
        %v1504 = vpop.f32.mrb[0].mxu0
        %1505 = vdwg.mxu0
        %1506 = vrot.lane.b32.xlu0 %v794, 48
        %v1507 = vpop.permute.xlu0 %1506
        %v1509 = vsel %vm798, %v1457, 0
        %v1512 = vsel %vm923, %v1507, 0
        %1514 = vmatprep.subr.bf16.mxu0 0
        %1515 = vmatpush1.bf16.msra.mxu0 %v1512
        %1516 = vmatprep.subr.bf16.mxu0 0
        %1517 = vmatpush1.bf16.msra.mxu0 0
        %1518 = vmatprep.subr.bf16.mxu0 0
        %1519 = vmatpush1.bf16.msra.mxu0 0
        %1520 = vmatprep.subr.bf16.mxu0 0
        %1521 = vmatpush1.bf16.msra.mxu0 0
        %1522 = vmatprep.subr.bf16.mxu0 0
        %1523 = vmatpush1.bf16.msra.mxu0 0
        %1524 = vmatprep.subr.bf16.mxu0 0
        %1525 = vmatpush1.bf16.msra.mxu0 0
        %1526 = vmatprep.subr.bf16.mxu0 0
        %1527 = vmatpush1.bf16.msra.mxu0 0
        %1528 = vmatprep.subr.bf16.mxu0 0
        %1529 = vmatpush1.bf16.msra.mxu0 0
        %1530 = vmatprep.subr.bf16.mxu0 0
        %1531 = vmatpush1.bf16.msra.mxu0 0
        %1532 = vmatprep.subr.bf16.mxu0 0
        %1533 = vmatpush1.bf16.msra.mxu0 0
        %1534 = vmatprep.subr.bf16.mxu0 0
        %1535 = vmatpush1.bf16.msra.mxu0 0
        %1536 = vmatprep.subr.bf16.mxu0 0
        %1537 = vmatpush1.bf16.msra.mxu0 0
        %1538 = vmatprep.subr.bf16.mxu0 0
        %1539 = vmatpush1.bf16.msra.mxu0 0
        %1540 = vmatprep.subr.bf16.mxu0 0
        %1541 = vmatpush1.bf16.msra.mxu0 0
        %1542 = vmatprep.subr.bf16.mxu0 0
        %1543 = vmatpush1.bf16.msra.mxu0 0
        %1544 = vmatprep.subr.bf16.mxu0 0
        %1545 = vmatpush1.bf16.msra.mxu0 0
        %1546 = vmatprep.mubr.bf16.mxu0 0
        %1547 = vmatmul.mubr.bf16.gmra.mrb[0].mxu0 %v1509
        %v1548 = vpop.f32.mrb[0].mxu0
        %v1549 = vadd.f32 0.0, %v1548
        %v1550 = vpop.f32.mrb[0].mxu0
        %v1551 = vpop.f32.mrb[0].mxu0
        %v1552 = vpop.f32.mrb[0].mxu0
        %1553 = vdwg.mxu0
        %v1554 = vpack.c.bf16 %v1549, %v1501
        %s1555 = scalar_lea.vmem %s659, 8
        %v1556 = vld [vmem:[%s1555] sm:$0xf]
        %v1558 = vsel %vm798, %v1554, 0
        %v1561 = vsel %vm923, %v1556, 0
        %1563 = vmatprep.subr.bf16.mxu0 0
        %1564 = vmatpush1.bf16.msra.mxu0 %v1561
        %1565 = vmatprep.subr.bf16.mxu0 0
        %1566 = vmatpush1.bf16.msra.mxu0 0
        %1567 = vmatprep.subr.bf16.mxu0 0
        %1568 = vmatpush1.bf16.msra.mxu0 0
        %1569 = vmatprep.subr.bf16.mxu0 0
        %1570 = vmatpush1.bf16.msra.mxu0 0
        %1571 = vmatprep.subr.bf16.mxu0 0
        %1572 = vmatpush1.bf16.msra.mxu0 0
        %1573 = vmatprep.subr.bf16.mxu0 0
        %1574 = vmatpush1.bf16.msra.mxu0 0
        %1575 = vmatprep.subr.bf16.mxu0 0
        %1576 = vmatpush1.bf16.msra.mxu0 0
        %1577 = vmatprep.subr.bf16.mxu0 0
        %1578 = vmatpush1.bf16.msra.mxu0 0
        %1579 = vmatprep.subr.bf16.mxu0 0
        %1580 = vmatpush1.bf16.msra.mxu0 0
        %1581 = vmatprep.subr.bf16.mxu0 0
        %1582 = vmatpush1.bf16.msra.mxu0 0
        %1583 = vmatprep.subr.bf16.mxu0 0
        %1584 = vmatpush1.bf16.msra.mxu0 0
        %1585 = vmatprep.subr.bf16.mxu0 0
        %1586 = vmatpush1.bf16.msra.mxu0 0
        %1587 = vmatprep.subr.bf16.mxu0 0
        %1588 = vmatpush1.bf16.msra.mxu0 0
        %1589 = vmatprep.subr.bf16.mxu0 0
        %1590 = vmatpush1.bf16.msra.mxu0 0
        %1591 = vmatprep.subr.bf16.mxu0 0
        %1592 = vmatpush1.bf16.msra.mxu0 0
        %1593 = vmatprep.subr.bf16.mxu0 0
        %1594 = vmatpush1.bf16.msra.mxu0 0
        %1595 = vmatprep.mubr.bf16.mxu0 0
        %1596 = vmatmul.mubr.bf16.gmra.mrb[0].mxu0 %v1558
        %v1597 = vpop.f32.mrb[0].mxu0
        %v1598 = vadd.f32 0.0, %v1597
        %v1599 = vpop.f32.mrb[0].mxu0
        %v1600 = vpop.f32.mrb[0].mxu0
        %v1601 = vadd.f32 0.0, %v1600
        %v1602 = vpop.f32.mrb[0].mxu0
        %1603 = vdwg.mxu0
        %v1604 = vadd.f32 %v1328, %v1598
        %v1605 = vadd.f32 %v1331, %v1601
        %1606 = vrot.lane.b32.xlu0 %v793, 104
        %v1607 = vpop.permute.xlu0 %1606
        %1608 = vrot.lane.b32.xlu0 %v793, 72
        %v1609 = vpop.permute.xlu0 %1608
        %v1611 = vsel %vm798, %v1607, 0
        %v1614 = vsel %vm798, %v1609, 0
        %1616 = vmatprep.subr.bf16.mxu0 0
        %1617 = vmatpush1.bf16.xpose.msra.mxu0 %v1614
        %1618 = vmatprep.subr.bf16.mxu0 0
        %1619 = vmatpush1.bf16.xpose.msra.mxu0 0
        %1620 = vmatprep.subr.bf16.mxu0 0
        %1621 = vmatpush1.bf16.xpose.msra.mxu0 0
        %1622 = vmatprep.subr.bf16.mxu0 0
        %1623 = vmatpush1.bf16.xpose.msra.mxu0 0
        %1624 = vmatprep.subr.bf16.mxu0 0
        %1625 = vmatpush1.bf16.xpose.msra.mxu0 0
        %1626 = vmatprep.subr.bf16.mxu0 0
        %1627 = vmatpush1.bf16.xpose.msra.mxu0 0
        %1628 = vmatprep.subr.bf16.mxu0 0
        %1629 = vmatpush1.bf16.xpose.msra.mxu0 0
        %1630 = vmatprep.subr.bf16.mxu0 0
        %1631 = vmatpush1.bf16.xpose.msra.mxu0 0
        %1632 = vmatprep.subr.bf16.mxu0 0
        %1633 = vmatpush1.bf16.xpose.msra.mxu0 0
        %1634 = vmatprep.subr.bf16.mxu0 0
        %1635 = vmatpush1.bf16.xpose.msra.mxu0 0
        %1636 = vmatprep.subr.bf16.mxu0 0
        %1637 = vmatpush1.bf16.xpose.msra.mxu0 0
        %1638 = vmatprep.subr.bf16.mxu0 0
        %1639 = vmatpush1.bf16.xpose.msra.mxu0 0
        %1640 = vmatprep.subr.bf16.mxu0 0
        %1641 = vmatpush1.bf16.xpose.msra.mxu0 0
        %1642 = vmatprep.subr.bf16.mxu0 0
        %1643 = vmatpush1.bf16.xpose.msra.mxu0 0
        %1644 = vmatprep.subr.bf16.mxu0 0
        %1645 = vmatpush1.bf16.xpose.msra.mxu0 0
        %1646 = vmatprep.subr.bf16.mxu0 0
        %1647 = vmatpush1.bf16.xpose.msra.mxu0 0
        %1648 = vmatprep.mubr.bf16.mxu0 0
        %1649 = vmatmul.mubr.bf16.gmra.mrb[0].mxu0 %v1611
        %v1650 = vpop.f32.mrb[0].mxu0
        %v1651 = vadd.f32 0.0, %v1650
        %v1652 = vpop.f32.mrb[0].mxu0
        %v1653 = vpop.f32.mrb[0].mxu0
        %v1654 = vpop.f32.mrb[0].mxu0
        %1655 = vdwg.mxu0
        %1656 = vrot.lane.b32.xlu0 %v794, 104
        %v1657 = vpop.permute.xlu0 %1656
        %1658 = vrot.lane.b32.xlu0 %v794, 72
        %v1659 = vpop.permute.xlu0 %1658
        %v1661 = vsel %vm798, %v1657, 0
        %v1664 = vsel %vm798, %v1659, 0
        %1666 = vmatprep.subr.bf16.mxu0 0
        %1667 = vmatpush1.bf16.xpose.msra.mxu0 %v1664
        %1668 = vmatprep.subr.bf16.mxu0 0
        %1669 = vmatpush1.bf16.xpose.msra.mxu0 0
        %1670 = vmatprep.subr.bf16.mxu0 0
        %1671 = vmatpush1.bf16.xpose.msra.mxu0 0
        %1672 = vmatprep.subr.bf16.mxu0 0
        %1673 = vmatpush1.bf16.xpose.msra.mxu0 0
        %1674 = vmatprep.subr.bf16.mxu0 0
        %1675 = vmatpush1.bf16.xpose.msra.mxu0 0
        %1676 = vmatprep.subr.bf16.mxu0 0
        %1677 = vmatpush1.bf16.xpose.msra.mxu0 0
        %1678 = vmatprep.subr.bf16.mxu0 0
        %1679 = vmatpush1.bf16.xpose.msra.mxu0 0
        %1680 = vmatprep.subr.bf16.mxu0 0
        %1681 = vmatpush1.bf16.xpose.msra.mxu0 0
        %1682 = vmatprep.subr.bf16.mxu0 0
        %1683 = vmatpush1.bf16.xpose.msra.mxu0 0
        %1684 = vmatprep.subr.bf16.mxu0 0
        %1685 = vmatpush1.bf16.xpose.msra.mxu0 0
        %1686 = vmatprep.subr.bf16.mxu0 0
        %1687 = vmatpush1.bf16.xpose.msra.mxu0 0
        %1688 = vmatprep.subr.bf16.mxu0 0
        %1689 = vmatpush1.bf16.xpose.msra.mxu0 0
        %1690 = vmatprep.subr.bf16.mxu0 0
        %1691 = vmatpush1.bf16.xpose.msra.mxu0 0
        %1692 = vmatprep.subr.bf16.mxu0 0
        %1693 = vmatpush1.bf16.xpose.msra.mxu0 0
        %1694 = vmatprep.subr.bf16.mxu0 0
        %1695 = vmatpush1.bf16.xpose.msra.mxu0 0
        %1696 = vmatprep.subr.bf16.mxu0 0
        %1697 = vmatpush1.bf16.xpose.msra.mxu0 0
        %1698 = vmatprep.mubr.bf16.mxu0 0
        %1699 = vmatmul.mubr.bf16.gmra.mrb[0].mxu0 %v1661
        %v1700 = vpop.f32.mrb[0].mxu0
        %v1701 = vadd.f32 0.0, %v1700
        %v1702 = vpop.f32.mrb[0].mxu0
        %v1703 = vpop.f32.mrb[0].mxu0
        %v1704 = vpop.f32.mrb[0].mxu0
        %1705 = vdwg.mxu0
        %v1706 = vsel %vm798, %v1651, -inf
        %1707 = vmax.xlane.f32.xlu0 %v1706
        %v1708 = vpop.xlane.xlu0 %1707
        %v1709 = vsel %vm798, %v1701, -inf
        %1710 = vmax.xlane.f32.xlu0 %v1709
        %v1711 = vpop.xlane.xlu0 %1710
        %v1712 = vsub.f32 %v1651, %v1708
        %v1713 = vsub.f32 %v1701, %v1711
        %v1714 = vmul.f32 %v1712, 1.442695
        %v1715 = vpow.pop %v1714
        %v1716 = vmul.f32 %v1713, 1.442695
        %v1717 = vpow.pop %v1716
        %v1718 = vsel %vm798, %v1715, 0.0
        %1719 = vadd.xlane.f32.xlu0 %v1718
        %v1720 = vpop.xlane.xlu0 %1719
        %v1721 = vsel %vm798, %v1717, 0.0
        %1722 = vadd.xlane.f32.xlu0 %v1721
        %v1723 = vpop.xlane.xlu0 %1722
        %v1724 = vrcp.pop %v1720
        %v1725 = vrcp.pop %v1723
        %v1726 = vmul.f32 %v1715, %v1724
        %v1727 = vmul.f32 %v1717, %v1725
        %v1728 = vpack.c.bf16 %v1726, %v1726
        %v1729 = vpack.c.bf16 %v1727, %v1727
        %1730 = vrot.lane.b32.xlu0 %v793, 40
        %v1731 = vpop.permute.xlu0 %1730
        %v1733 = vsel %vm798, %v1728, 0
        %v1736 = vsel %vm923, %v1731, 0
        %1738 = vmatprep.subr.bf16.mxu0 0
        %1739 = vmatpush1.bf16.msra.mxu0 %v1736
        %1740 = vmatprep.subr.bf16.mxu0 0
        %1741 = vmatpush1.bf16.msra.mxu0 0
        %1742 = vmatprep.subr.bf16.mxu0 0
        %1743 = vmatpush1.bf16.msra.mxu0 0
        %1744 = vmatprep.subr.bf16.mxu0 0
        %1745 = vmatpush1.bf16.msra.mxu0 0
        %1746 = vmatprep.subr.bf16.mxu0 0
        %1747 = vmatpush1.bf16.msra.mxu0 0
        %1748 = vmatprep.subr.bf16.mxu0 0
        %1749 = vmatpush1.bf16.msra.mxu0 0
        %1750 = vmatprep.subr.bf16.mxu0 0
        %1751 = vmatpush1.bf16.msra.mxu0 0
        %1752 = vmatprep.subr.bf16.mxu0 0
        %1753 = vmatpush1.bf16.msra.mxu0 0
        %1754 = vmatprep.subr.bf16.mxu0 0
        %1755 = vmatpush1.bf16.msra.mxu0 0
        %1756 = vmatprep.subr.bf16.mxu0 0
        %1757 = vmatpush1.bf16.msra.mxu0 0
        %1758 = vmatprep.subr.bf16.mxu0 0
        %1759 = vmatpush1.bf16.msra.mxu0 0
        %1760 = vmatprep.subr.bf16.mxu0 0
        %1761 = vmatpush1.bf16.msra.mxu0 0
        %1762 = vmatprep.subr.bf16.mxu0 0
        %1763 = vmatpush1.bf16.msra.mxu0 0
        %1764 = vmatprep.subr.bf16.mxu0 0
        %1765 = vmatpush1.bf16.msra.mxu0 0
        %1766 = vmatprep.subr.bf16.mxu0 0
        %1767 = vmatpush1.bf16.msra.mxu0 0
        %1768 = vmatprep.subr.bf16.mxu0 0
        %1769 = vmatpush1.bf16.msra.mxu0 0
        %1770 = vmatprep.mubr.bf16.mxu0 0
        %1771 = vmatmul.mubr.bf16.gmra.mrb[0].mxu0 %v1733
        %v1772 = vpop.f32.mrb[0].mxu0
        %v1773 = vadd.f32 0.0, %v1772
        %v1774 = vpop.f32.mrb[0].mxu0
        %v1775 = vpop.f32.mrb[0].mxu0
        %v1776 = vpop.f32.mrb[0].mxu0
        %1777 = vdwg.mxu0
        %1778 = vrot.lane.b32.xlu0 %v794, 40
        %v1779 = vpop.permute.xlu0 %1778
        %v1781 = vsel %vm798, %v1729, 0
        %v1784 = vsel %vm923, %v1779, 0
        %1786 = vmatprep.subr.bf16.mxu0 0
        %1787 = vmatpush1.bf16.msra.mxu0 %v1784
        %1788 = vmatprep.subr.bf16.mxu0 0
        %1789 = vmatpush1.bf16.msra.mxu0 0
        %1790 = vmatprep.subr.bf16.mxu0 0
        %1791 = vmatpush1.bf16.msra.mxu0 0
        %1792 = vmatprep.subr.bf16.mxu0 0
        %1793 = vmatpush1.bf16.msra.mxu0 0
        %1794 = vmatprep.subr.bf16.mxu0 0
        %1795 = vmatpush1.bf16.msra.mxu0 0
        %1796 = vmatprep.subr.bf16.mxu0 0
        %1797 = vmatpush1.bf16.msra.mxu0 0
        %1798 = vmatprep.subr.bf16.mxu0 0
        %1799 = vmatpush1.bf16.msra.mxu0 0
        %1800 = vmatprep.subr.bf16.mxu0 0
        %1801 = vmatpush1.bf16.msra.mxu0 0
        %1802 = vmatprep.subr.bf16.mxu0 0
        %1803 = vmatpush1.bf16.msra.mxu0 0
        %1804 = vmatprep.subr.bf16.mxu0 0
        %1805 = vmatpush1.bf16.msra.mxu0 0
        %1806 = vmatprep.subr.bf16.mxu0 0
        %1807 = vmatpush1.bf16.msra.mxu0 0
        %1808 = vmatprep.subr.bf16.mxu0 0
        %1809 = vmatpush1.bf16.msra.mxu0 0
        %1810 = vmatprep.subr.bf16.mxu0 0
        %1811 = vmatpush1.bf16.msra.mxu0 0
        %1812 = vmatprep.subr.bf16.mxu0 0
        %1813 = vmatpush1.bf16.msra.mxu0 0
        %1814 = vmatprep.subr.bf16.mxu0 0
        %1815 = vmatpush1.bf16.msra.mxu0 0
        %1816 = vmatprep.subr.bf16.mxu0 0
        %1817 = vmatpush1.bf16.msra.mxu0 0
        %1818 = vmatprep.mubr.bf16.mxu0 0
        %1819 = vmatmul.mubr.bf16.gmra.mrb[0].mxu0 %v1781
        %v1820 = vpop.f32.mrb[0].mxu0
        %v1821 = vadd.f32 0.0, %v1820
        %v1822 = vpop.f32.mrb[0].mxu0
        %v1823 = vpop.f32.mrb[0].mxu0
        %v1824 = vpop.f32.mrb[0].mxu0
        %1825 = vdwg.mxu0
        %v1826 = vpack.c.bf16 %v1821, %v1773
        %s1827 = scalar_lea.vmem %s659, 12
        %v1828 = vld [vmem:[%s1827] sm:$0xf]
        %v1830 = vsel %vm798, %v1826, 0
        %v1833 = vsel %vm923, %v1828, 0
        %1835 = vmatprep.subr.bf16.mxu0 0
        %1836 = vmatpush1.bf16.msra.mxu0 %v1833
        %1837 = vmatprep.subr.bf16.mxu0 0
        %1838 = vmatpush1.bf16.msra.mxu0 0
        %1839 = vmatprep.subr.bf16.mxu0 0
        %1840 = vmatpush1.bf16.msra.mxu0 0
        %1841 = vmatprep.subr.bf16.mxu0 0
        %1842 = vmatpush1.bf16.msra.mxu0 0
        %1843 = vmatprep.subr.bf16.mxu0 0
        %1844 = vmatpush1.bf16.msra.mxu0 0
        %1845 = vmatprep.subr.bf16.mxu0 0
        %1846 = vmatpush1.bf16.msra.mxu0 0
        %1847 = vmatprep.subr.bf16.mxu0 0
        %1848 = vmatpush1.bf16.msra.mxu0 0
        %1849 = vmatprep.subr.bf16.mxu0 0
        %1850 = vmatpush1.bf16.msra.mxu0 0
        %1851 = vmatprep.subr.bf16.mxu0 0
        %1852 = vmatpush1.bf16.msra.mxu0 0
        %1853 = vmatprep.subr.bf16.mxu0 0
        %1854 = vmatpush1.bf16.msra.mxu0 0
        %1855 = vmatprep.subr.bf16.mxu0 0
        %1856 = vmatpush1.bf16.msra.mxu0 0
        %1857 = vmatprep.subr.bf16.mxu0 0
        %1858 = vmatpush1.bf16.msra.mxu0 0
        %1859 = vmatprep.subr.bf16.mxu0 0
        %1860 = vmatpush1.bf16.msra.mxu0 0
        %1861 = vmatprep.subr.bf16.mxu0 0
        %1862 = vmatpush1.bf16.msra.mxu0 0
        %1863 = vmatprep.subr.bf16.mxu0 0
        %1864 = vmatpush1.bf16.msra.mxu0 0
        %1865 = vmatprep.subr.bf16.mxu0 0
        %1866 = vmatpush1.bf16.msra.mxu0 0
        %1867 = vmatprep.mubr.bf16.mxu0 0
        %1868 = vmatmul.mubr.bf16.gmra.mrb[0].mxu0 %v1830
        %v1869 = vpop.f32.mrb[0].mxu0
        %v1870 = vadd.f32 0.0, %v1869
        %v1871 = vpop.f32.mrb[0].mxu0
        %v1872 = vpop.f32.mrb[0].mxu0
        %v1873 = vadd.f32 0.0, %v1872
        %v1874 = vpop.f32.mrb[0].mxu0
        %1875 = vdwg.mxu0
        %v1876 = vadd.f32 %v1604, %v1870
        %v1877 = vadd.f32 %v1605, %v1873
        %v1878 = vadd.f32 %v684, %v1876
        %v1879 = vadd.f32 %v685, %v1877
        %v1880 = vld [vmem:[%s543] sm:$0x1]
        %v1882 = vlaneseq
        %v1883 = vshrl.u32 %v1882, 7
        %v1884 = vsub.s32 0, %v1883
        %v1885 = vrot.slane %v1880, %v1884
        %v1887 = vadd.f32 %v1878, %v1885
        %v1888 = vadd.f32 %v1879, %v1885
        %v1889 = vld [vmem:[%s551] sm:$0x1]
        %v1890 = vld [vmem:[%s559] sm:$0x1]
        %v1891 = vsel %vm688, %v1887, 0.0
        %1892 = vadd.xlane.f32.xlu0 %v1891
        %v1893 = vpop.xlane.xlu0 %1892
        %v1894 = vsel %vm688, %v1888, 0.0
        %1895 = vadd.xlane.f32.xlu0 %v1894
        %v1896 = vpop.xlane.xlu0 %1895
        %v1897 = vmul.f32 %v1893, %v695
        %v1898 = vmul.f32 %v1896, %v695
        %v1899 = vsub.f32 %v1887, %v1897
        %v1900 = vsub.f32 %v1888, %v1898
        %v1901 = vmul.f32 %v1899, %v1899
        %v1902 = vmul.f32 %v1900, %v1900
        %v1903 = vsel %vm688, %v1901, 0.0
        %1904 = vadd.xlane.f32.xlu0 %v1903
        %v1905 = vpop.xlane.xlu0 %1904
        %v1906 = vsel %vm688, %v1902, 0.0
        %1907 = vadd.xlane.f32.xlu0 %v1906
        %v1908 = vpop.xlane.xlu0 %1907
        %v1909 = vmul.f32 %v1905, %v695
        %v1910 = vmul.f32 %v1908, %v695
        %v1911 = vadd.f32 %v1909, 1e-05
        %v1912 = vadd.f32 %v1910, 1e-05
        %v1913 = vrsqrt.pop %v1911
        %v1914 = vrsqrt.pop %v1912
        %v1915 = vmul.f32 %v1899, %v1913
        %v1916 = vmul.f32 %v1900, %v1914
        %v1918 = vlaneseq
        %v1919 = vshrl.u32 %v1918, 7
        %v1920 = vsub.s32 0, %v1919
        %v1921 = vrot.slane %v1889, %v1920
        %v1923 = vmul.f32 %v1915, %v1921
        %v1924 = vmul.f32 %v1916, %v1921
        %v1926 = vlaneseq
        %v1927 = vshrl.u32 %v1926, 7
        %v1928 = vsub.s32 0, %v1927
        %v1929 = vrot.slane %v1890, %v1928
        %v1931 = vadd.f32 %v1923, %v1929
        %v1932 = vadd.f32 %v1924, %v1929
        %v1933 = vpack.c.bf16 %v1932, %v1931
        %v1934 = vld [vmem:[%s664] sm:$0xf]
        %v1935 = vld [vmem:[%s664 + $0x4] sm:$0xf]
        %v1936 = vld [vmem:[%s664 + $0x8] sm:$0xf]
        %v1937 = vld [vmem:[%s664 + $0xc] sm:$0xf]
        %v1938 = vld [vmem:[%s567] sm:$0x1]
        %v1940 = vlaneseq
        %v1941 = vshrl.u32 %v1940, 7
        %v1942 = vsub.s32 0, %v1941
        %v1943 = vrot.slane %v1938, %v1942
        %v1949 = vunpack.c.l.b16 %v1934
        %v1950 = vunpack.c.l.b16 %v1935
        %v1951 = vunpack.c.l.b16 %v1936
        %v1952 = vunpack.c.l.b16 %v1937
        %v1953 = vpack.c.b16 %v1950, %v1949
        %v1954 = vpack.c.b16 %v1952, %v1951
        %v1958 = vsel %vm688, %v1933, 0
        %1960 = vmatprep.subr.bf16.mxu0 0
        %1961 = vmatpush1.bf16.msra.mxu0 %v1953
        %1962 = vmatprep.subr.bf16.mxu0 0
        %1963 = vmatpush1.bf16.msra.mxu0 %v1954
        %1964 = vmatprep.subr.bf16.mxu0 0
        %1965 = vmatpush1.bf16.msra.mxu0 0
        %1966 = vmatprep.subr.bf16.mxu0 0
        %1967 = vmatpush1.bf16.msra.mxu0 0
        %1968 = vmatprep.subr.bf16.mxu0 0
        %1969 = vmatpush1.bf16.msra.mxu0 0
        %1970 = vmatprep.subr.bf16.mxu0 0
        %1971 = vmatpush1.bf16.msra.mxu0 0
        %1972 = vmatprep.subr.bf16.mxu0 0
        %1973 = vmatpush1.bf16.msra.mxu0 0
        %1974 = vmatprep.subr.bf16.mxu0 0
        %1975 = vmatpush1.bf16.msra.mxu0 0
        %1976 = vmatprep.subr.bf16.mxu0 0
        %1977 = vmatpush1.bf16.msra.mxu0 0
        %1978 = vmatprep.subr.bf16.mxu0 0
        %1979 = vmatpush1.bf16.msra.mxu0 0
        %1980 = vmatprep.subr.bf16.mxu0 0
        %1981 = vmatpush1.bf16.msra.mxu0 0
        %1982 = vmatprep.subr.bf16.mxu0 0
        %1983 = vmatpush1.bf16.msra.mxu0 0
        %1984 = vmatprep.subr.bf16.mxu0 0
        %1985 = vmatpush1.bf16.msra.mxu0 0
        %1986 = vmatprep.subr.bf16.mxu0 0
        %1987 = vmatpush1.bf16.msra.mxu0 0
        %1988 = vmatprep.subr.bf16.mxu0 0
        %1989 = vmatpush1.bf16.msra.mxu0 0
        %1990 = vmatprep.subr.bf16.mxu0 0
        %1991 = vmatpush1.bf16.msra.mxu0 0
        %1992 = vmatprep.mubr.bf16.mxu0 0
        %1993 = vmatmul.mubr.bf16.gmra.mrb[0].mxu0 %v1958
        %v1994 = vpop.f32.mrb[0].mxu0
        %v1995 = vadd.f32 %v1943, %v1994
        %v1996 = vpop.f32.mrb[0].mxu0
        %v1997 = vpop.f32.mrb[0].mxu0
        %v1998 = vadd.f32 %v1943, %v1997
        %v1999 = vpop.f32.mrb[0].mxu0
        %2000 = vdwg.mxu0
        %v2001 = vmul.f32 %v1995, 0.5
        %v2002 = vmul.f32 %v1998, 0.5
        %v2003 = vmul.f32 %v1995, 0.70710677
        %v2004 = vmul.f32 %v1998, 0.70710677
        %v2005 = vand.u32 2147483647, %v2003
        %v2006 = vand.u32 2147483647, %v2004
        %v2007 = vmul.f32 %v2005, 0.3275911
        %v2008 = vmul.f32 %v2006, 0.3275911
        %v2009 = vadd.f32 %v2007, 1.0
        %v2010 = vadd.f32 %v2008, 1.0
        %v2011 = vrcp.pop %v2009
        %v2012 = vmul.f32 1.0, %v2011
        %v2013 = vrcp.pop %v2010
        %v2014 = vmul.f32 1.0, %v2013
        %v2015 = vmul.f32 %v2012, 1.0614054
        %v2016 = vmul.f32 %v2014, 1.0614054
        %v2017 = vadd.f32 %v2015, -1.4531521
        %v2018 = vadd.f32 %v2016, -1.4531521
        %v2019 = vmul.f32 %v2017, %v2012
        %v2020 = vmul.f32 %v2018, %v2014
        %v2021 = vadd.f32 %v2019, 1.4214138
        %v2022 = vadd.f32 %v2020, 1.4214138
        %v2023 = vmul.f32 %v2021, %v2012
        %v2024 = vmul.f32 %v2022, %v2014
        %v2025 = vadd.f32 %v2023, -0.28449672
        %v2026 = vadd.f32 %v2024, -0.28449672
        %v2027 = vmul.f32 %v2025, %v2012
        %v2028 = vmul.f32 %v2026, %v2014
        %v2029 = vadd.f32 %v2027, 0.2548296
        %v2030 = vadd.f32 %v2028, 0.2548296
        %v2031 = vmul.f32 %v2029, %v2012
        %v2032 = vmul.f32 %v2030, %v2014
        %v2033 = vsub.f32 0.0, %v2005
        %v2034 = vsub.f32 0.0, %v2006
        %v2035 = vmul.f32 %v2033, %v2005
        %v2036 = vmul.f32 %v2034, %v2006
        %v2037 = vmul.f32 %v2035, 1.442695
        %v2038 = vpow.pop %v2037
        %v2039 = vmul.f32 %v2036, 1.442695
        %v2040 = vpow.pop %v2039
        %v2041 = vmul.f32 %v2031, %v2038
        %v2042 = vmul.f32 %v2032, %v2040
        %v2043 = vsub.f32 1.0, %v2041
        %v2044 = vsub.f32 1.0, %v2042
        %vm2045 = vcmp.ge.f32.partialorder %v2003, 0.0
        %vm2046 = vcmp.ge.f32.partialorder %v2004, 0.0
        %v2047 = vsub.f32 0.0, %v2043
        %v2048 = vsub.f32 0.0, %v2044
        %v2049 = vsel %vm2045, %v2043, %v2047
        %v2050 = vsel %vm2046, %v2044, %v2048
        %v2051 = vadd.f32 %v2049, 1.0
        %v2052 = vadd.f32 %v2050, 1.0
        %v2053 = vmul.f32 %v2001, %v2051
        %v2054 = vmul.f32 %v2002, %v2052
        %v2055 = vpack.c.bf16 %v2054, %v2053
        %v2056 = vld [vmem:[%s669] sm:$0xf]
        %v2057 = vld [vmem:[%s669 + $0x4] sm:$0xf]
        %v2058 = vld [vmem:[%s669 + $0x8] sm:$0xf]
        %v2059 = vld [vmem:[%s669 + $0xc] sm:$0xf]
        %v2060 = vld [vmem:[%s669 + $0x10] sm:$0xf]
        %v2061 = vld [vmem:[%s669 + $0x14] sm:$0xf]
        %v2062 = vld [vmem:[%s669 + $0x18] sm:$0xf]
        %v2063 = vld [vmem:[%s669 + $0x1c] sm:$0xf]
        %v2064 = vld [vmem:[%s672] sm:$0x1]
        %v2066 = vlaneseq
        %v2067 = vshrl.u32 %v2066, 7
        %v2068 = vsub.s32 0, %v2067
        %v2069 = vrot.slane %v2064, %v2068
        %v2079 = vunpack.c.l.b16 %v2056
        %v2080 = vunpack.c.l.b16 %v2057
        %v2081 = vunpack.c.l.b16 %v2058
        %v2082 = vunpack.c.l.b16 %v2059
        %v2083 = vunpack.c.l.b16 %v2060
        %v2084 = vunpack.c.l.b16 %v2061
        %v2085 = vunpack.c.l.b16 %v2062
        %v2086 = vunpack.c.l.b16 %v2063
        %v2087 = vpack.c.b16 %v2080, %v2079
        %v2088 = vpack.c.b16 %v2082, %v2081
        %v2089 = vpack.c.b16 %v2084, %v2083
        %v2090 = vpack.c.b16 %v2086, %v2085
        %vm2095 = vcmask 523264
        %v2097 = vsel %vm2095, %v2055, 0
        %2099 = vmatprep.subr.bf16.mxu0 0
        %2100 = vmatpush1.bf16.msra.mxu0 %v2087
        %2101 = vmatprep.subr.bf16.mxu0 0
        %2102 = vmatpush1.bf16.msra.mxu0 %v2088
        %2103 = vmatprep.subr.bf16.mxu0 0
        %2104 = vmatpush1.bf16.msra.mxu0 %v2089
        %2105 = vmatprep.subr.bf16.mxu0 0
        %2106 = vmatpush1.bf16.msra.mxu0 %v2090
        %2107 = vmatprep.subr.bf16.mxu0 0
        %2108 = vmatpush1.bf16.msra.mxu0 0
        %2109 = vmatprep.subr.bf16.mxu0 0
        %2110 = vmatpush1.bf16.msra.mxu0 0
        %2111 = vmatprep.subr.bf16.mxu0 0
        %2112 = vmatpush1.bf16.msra.mxu0 0
        %2113 = vmatprep.subr.bf16.mxu0 0
        %2114 = vmatpush1.bf16.msra.mxu0 0
        %2115 = vmatprep.subr.bf16.mxu0 0
        %2116 = vmatpush1.bf16.msra.mxu0 0
        %2117 = vmatprep.subr.bf16.mxu0 0
        %2118 = vmatpush1.bf16.msra.mxu0 0
        %2119 = vmatprep.subr.bf16.mxu0 0
        %2120 = vmatpush1.bf16.msra.mxu0 0
        %2121 = vmatprep.subr.bf16.mxu0 0
        %2122 = vmatpush1.bf16.msra.mxu0 0
        %2123 = vmatprep.subr.bf16.mxu0 0
        %2124 = vmatpush1.bf16.msra.mxu0 0
        %2125 = vmatprep.subr.bf16.mxu0 0
        %2126 = vmatpush1.bf16.msra.mxu0 0
        %2127 = vmatprep.subr.bf16.mxu0 0
        %2128 = vmatpush1.bf16.msra.mxu0 0
        %2129 = vmatprep.subr.bf16.mxu0 0
        %2130 = vmatpush1.bf16.msra.mxu0 0
        %2131 = vmatprep.mubr.bf16.mxu0 0
        %2132 = vmatmul.mubr.bf16.gmra.mrb[0].mxu0 %v2097
        %v2133 = vpop.f32.mrb[0].mxu0
        %v2134 = vadd.f32 %v2069, %v2133
        %v2135 = vpop.f32.mrb[0].mxu0
        %v2136 = vpop.f32.mrb[0].mxu0
        %v2137 = vadd.f32 %v2069, %v2136
        %v2138 = vpop.f32.mrb[0].mxu0
        %2139 = vdwg.mxu0
        %v2140 = vadd.f32 %v1887, %v2134
        %v2141 = vadd.f32 %v1888, %v2137
        %2142 = vst.msk [vmem:[#allocation11] sm:$0xff] %vm688, %v2140
        %2143 = vst.msk [vmem:[#allocation11 + $0x8] sm:$0xff] %vm688, %v2141
        // Predicated region
        $region93: #{tpu_custom_call.1} parent=67 // pred_check
          %p2144 = pneg %p373
        $region94: #{tpu_custom_call.1} parent=67 // pred_check_branch
          %2146 = sbr.rel (%p2144) target = $region96
        $region95: #{tpu_custom_call.1} parent=67 // pred_region
          %s2147 = smul.u32 2, %s35
          %s2149 = ssub.s32 256, 256
          %2150 = vsyncadd [#allocation4], %s2149
          %s2151 = smul.addr %s2147, 128
          %s2152 = scalar_lea.hbm %s12, %s2151
          %s2153 = sshll.u32 [#allocation11], 4
          %s2154 = int_to_ptr.vmem [resolvable:$true] %s2153
          %2159 = dma.vmem_to_hbm [thread:$0]  %s2154, 256, %s2152, [#allocation4], 128, 128, 8
        $region96: #{tpu_custom_call.1} parent=67 // pred_fallthru
          _
        // Predicated region
        $region97: #{tpu_custom_call.1} parent=67 // pred_check
          %p2160 = pneg %p373
        $region98: #{tpu_custom_call.1} parent=67 // pred_check_branch
          %2162 = sbr.rel (%p2160) target = $region100
        $region99: #{tpu_custom_call.1} parent=67 // pred_region
          %2163 = dma.done [#allocation4], 256
        $region100: #{tpu_custom_call.1} parent=67 // pred_fallthru
          _
      $region68: #{tpu_custom_call.1} parent=5 // pred_fallthru
        _
      %p2164 = scmp.le.s32.totalorder 2, %s26
      // Predicated region
      $region101: #{tpu_custom_call.1} parent=5 // pred_check
        %p2165 = pneg %p2164
      $region102: #{tpu_custom_call.1} parent=5 // pred_check_branch
        %2167 = sbr.rel (%p2165) target = $region104
      $region103: #{tpu_custom_call.1} parent=5 // pred_region
        %s2168 = ssub.s32 %s26, 2
      $region104: #{tpu_custom_call.1} parent=5 // pred_fallthru
        _
    $region6: #{tpu_custom_call.1} parent=1 // loop_footer
      %s30 = sadd.s32 1, %s26
    $region7: #{tpu_custom_call.1} parent=1 // loop_footer_branch
      %25 = sbr.rel target = $region3
    $region8: #{tpu_custom_call.1} parent=1 // loop_exit
      _
    %2169 = vsyncpa [#allocation3], 1
    %s2170 = scalar_lea.sflag [#allocation3], 1
    %2171 = vsyncpa %s2170, 1
    %2172 = vsyncpa [#allocation6], 1
    %s2173 = scalar_lea.sflag [#allocation6], 1
    %2174 = vsyncpa %s2173, 1
    %2175 = vsyncpa [#allocation9], 1
    %s2176 = scalar_lea.sflag [#allocation9], 1
    %2177 = vsyncpa %s2176, 1
    %2178 = vsyncpa [#allocation4], 1
    %s2179 = scalar_lea.sflag [#allocation4], 1
    %2180 = vsyncpa %s2179, 1

</llo_original>
